<compile_context>
chip_gen: v7x
topology: tpu7x:2x2x1
jax: 0.10.0
libtpu: 0.0.40
codegen_flags: <defaults>
</compile_context>

<pallas_src>
import jax
import jax.numpy as jnp
import numpy as np
from jax.experimental import pallas as pl
from jax.experimental.pallas import tpu as pltpu  # noqa: F401  (TPU backend assumed)


# ----------------------------- model config ---------------------------------
D_MODEL = 32                    # embed_dim
N_HEAD = 4
DIM_FF = 64                     # dim_feedforward
HEAD_DIM = D_MODEL // N_HEAD    # 8
LN_EPS = 1e-5
SEQ = 8
BATCH = 2

N_TOK = SEQ * BATCH             # 16 tokens processed in one fused slab
LANES = 128
PACK = LANES // D_MODEL         # token rows packed per lane-dense output row (4)
OUT_ROWS = N_TOK // PACK        # lane-dense output rows (4)
VEC_W = 3 * D_MODEL             # width of the packed row-vector parameter slab
NEG_INF = -1e30                 # additive mask for cross-batch attention


def _layer_norm(x, gamma, beta, eps):
    mean = jnp.mean(x, axis=-1, keepdims=True)
    var = jnp.mean(jnp.square(x - mean), axis=-1, keepdims=True)
    return (x - mean) * jax.lax.rsqrt(var + eps) * gamma + beta


# ------------------------------- kernel --------------------------------------
def encoder_layer_kernel(x_ref, wqkv_ref, wo_ref, w1_ref, w2_ref,
                         vecs_ref, bias_ref, o_ref):
    E, H, F = D_MODEL, N_HEAD, DIM_FF
    scaling = float(HEAD_DIM) ** -0.5

    x = x_ref[...]                                   # (N_TOK, E), rows = s*B + b

    # packed row-vector parameters (one small operand instead of twelve)
    b_qkv = vecs_ref[0:1, 0:3 * E]                   # (1, 3E)
    b_out = vecs_ref[1:2, 0:E]                       # (1, E)
    b_ff1 = vecs_ref[2:3, 0:F]                       # (1, F)
    b_ff2 = vecs_ref[3:4, 0:E]                       # (1, E)
    g1 = vecs_ref[4:5, 0:E]
    be1 = vecs_ref[5:6, 0:E]
    g2 = vecs_ref[6:7, 0:E]
    be2 = vecs_ref[7:8, 0:E]

    # --- self-attention: fused QKV projection (weights pre-transposed) ---
    qkv = jnp.dot(x, wqkv_ref[...], preferred_element_type=jnp.float32) + b_qkv
    q = qkv[:, 0:E] * scaling                        # scale after bias (PyTorch)
    k = qkv[:, E:2 * E]
    v = qkv[:, 2 * E:3 * E]

    attn_bias = bias_ref[...]                        # (N_TOK, N_TOK) block-diag 0/-1e30

    attn = jnp.zeros((N_TOK, E), jnp.float32)
    for h in range(H):                               # static unroll; heads via lane masks
        hm = vecs_ref[8 + h:9 + h, 0:E]              # (1, E) 0/1 mask of this head's lanes
        # scores: contraction over lanes of (q*mask) . k == per-head q_h . k_h^T
        s = jax.lax.dot_general(q * hm, k, (((1,), (1,)), ((), ())),
                                preferred_element_type=jnp.float32)   # (N, N)
        s = s + attn_bias                            # kill cross-batch entries
        s = s - jnp.max(s, axis=-1, keepdims=True)
        p = jnp.exp(s)
        p = p * pl.reciprocal(jnp.sum(p, axis=-1, keepdims=True), approx=True)
        # masked V: only this head's output columns receive a contribution
        attn = attn + jnp.dot(p, v * hm, preferred_element_type=jnp.float32)

    attn = jnp.dot(attn, wo_ref[...], preferred_element_type=jnp.float32) + b_out

    # --- residual + norm1 ---
    x1 = _layer_norm(x + attn, g1, be1, LN_EPS)

    # --- feed-forward: linear1 -> relu -> linear2 ---
    h1 = jnp.maximum(
        jnp.dot(x1, w1_ref[...], preferred_element_type=jnp.float32) + b_ff1, 0.0)
    ff = jnp.dot(h1, w2_ref[...], preferred_element_type=jnp.float32) + b_ff2

    # --- residual + norm2 ---
    y = _layer_norm(x1 + ff, g2, be2, LN_EPS)        # (N_TOK, E)

    # lane-dense store: pack (N_TOK, E) -> (OUT_ROWS, PACK*E) = (4, 128)
    # out[r, E*j:E*(j+1)] = y[OUT_ROWS*j + r]
    o_ref[...] = jnp.concatenate(
        [y[OUT_ROWS * j:OUT_ROWS * (j + 1), :] for j in range(PACK)], axis=1)


# ------------------------------ wrapper ---------------------------------------
def transformer_encoder_layer(src, params):
    """src: (S, B, E) float32 (PyTorch layout). Returns (S, B, E)."""
    S, B, E = src.shape
    F = params["linear1_weight"].shape[0]
    N = S * B

    # tokens in s-major order (row = s*B + b): a free reshape, no transpose
    x2d = src.reshape(N, E)

    # pre-transpose weights once to (in, out) so the kernel never transposes
    wqkv_t = params["in_proj_weight"].T              # (E, 3E)
    wo_t = params["out_proj_weight"].T               # (E, E)
    w1_t = params["linear1_weight"].T                # (E, F)
    w2_t = params["linear2_weight"].T                # (F, E)

    def row(v):
        return jnp.pad(v.astype(jnp.float32), (0, VEC_W - v.shape[0]))[None, :]

    head_mask = np.zeros((N_HEAD, VEC_W), np.float32)
    for h in range(N_HEAD):
        head_mask[h, h * HEAD_DIM:(h + 1) * HEAD_DIM] = 1.0

    # pack all small row-vector params + head masks into one (8 + H, 3E) slab
    vecs = jnp.concatenate(
        [row(params["in_proj_bias"]), row(params["out_proj_bias"]),
         row(params["linear1_bias"]), row(params["linear2_bias"]),
         row(params["norm1_gamma"]), row(params["norm1_beta"]),
         row(params["norm2_gamma"]), row(params["norm2_beta"]),
         jnp.asarray(head_mask)], axis=0)            # (8 + H, 3E)

    # block-diagonal attention bias: token r belongs to batch r % B
    tok = np.arange(N)
    same_batch = (tok[:, None] % B) == (tok[None, :] % B)
    attn_bias = jnp.asarray(np.where(same_batch, 0.0, NEG_INF).astype(np.float32))

    out = pl.pallas_call(
        encoder_layer_kernel,
        out_shape=jax.ShapeDtypeStruct((OUT_ROWS, LANES), jnp.float32),
    )(x2d, wqkv_t, wo_t, w1_t, w2_t, vecs, attn_bias)

    # unpack the lane-dense slab: out[r, E*j:E*(j+1)] = y[OUT_ROWS*j + r]
    y = out.reshape(OUT_ROWS, PACK, E).transpose(1, 0, 2).reshape(N, E)
    return y.reshape(S, B, E)


# ------------------------- pure-JAX reference ---------------------------------
def reference(src, params):
    S, B, E = src.shape
    H, Dh = N_HEAD, HEAD_DIM
    scaling = float(Dh) ** -0.5
    x = src                                                  # (S, B, E)
    qkv = jnp.einsum("sbe,fe->sbf", x, params["in_proj_weight"]) + params["in_proj_bias"]
    q, k, v = jnp.split(qkv, 3, axis=-1)
    q = q * scaling

    def split_heads(t):                                      # (S,B,E) -> (B*H, S, Dh)
        return t.reshape(S, B * H, Dh).transpose(1, 0, 2)

    qh, kh, vh = split_heads(q), split_heads(k), split_heads(v)
    w = jax.nn.softmax(jnp.einsum("nsd,ntd->nst", qh, kh), axis=-1)
    o = jnp.einsum("nst,ntd->nsd", w, vh)
    o = o.transpose(1, 0, 2).reshape(S, B, E)
    o = jnp.einsum("sbe,fe->sbf", o, params["out_proj_weight"]) + params["out_proj_bias"]
    x1 = _layer_norm(x + o, params["norm1_gamma"], params["norm1_beta"], LN_EPS)
    h1 = jax.nn.relu(jnp.einsum("sbe,fe->sbf", x1, params["linear1_weight"])
                     + params["linear1_bias"])
    ff = jnp.einsum("sbf,ef->sbe", h1, params["linear2_weight"]) + params["linear2_bias"]
    return _layer_norm(x1 + ff, params["norm2_gamma"], params["norm2_beta"], LN_EPS)


# -------------------------------- setup ----------------------------------------
def make_params(key):
    ks = jax.random.split(key, 12)
    E, F = D_MODEL, DIM_FF

    def xavier(k, shape):
        fan_out, fan_in = shape
        lim = np.sqrt(6.0 / (fan_in + fan_out))
        return jax.random.uniform(k, shape, jnp.float32, -lim, lim)

    return {
        "in_proj_weight": xavier(ks[0], (3 * E, E)),
        "in_proj_bias": 0.02 * jax.random.normal(ks[1], (3 * E,), jnp.float32),
        "out_proj_weight": xavier(ks[2], (E, E)),
        "out_proj_bias": 0.02 * jax.random.normal(ks[3], (E,), jnp.float32),
        "linear1_weight": xavier(ks[4], (F, E)),
        "linear1_bias": 0.02 * jax.random.normal(ks[5], (F,), jnp.float32),
        "linear2_weight": xavier(ks[6], (E, F)),
        "linear2_bias": 0.02 * jax.random.normal(ks[7], (E,), jnp.float32),
        "norm1_gamma": 1.0 + 0.1 * jax.random.normal(ks[8], (E,), jnp.float32),
        "norm1_beta": 0.05 * jax.random.normal(ks[9], (E,), jnp.float32),
        "norm2_gamma": 1.0 + 0.1 * jax.random.normal(ks[10], (E,), jnp.float32),
        "norm2_beta": 0.05 * jax.random.normal(ks[11], (E,), jnp.float32),
    }


if __name__ == "__main__":
    key = jax.random.PRNGKey(0)
    k_src, k_par = jax.random.split(key)
    src = jax.random.normal(k_src, (SEQ, BATCH, D_MODEL), jnp.float32)  # (S, B, E)
    params = make_params(k_par)

    fwd = jax.jit(transformer_encoder_layer)
    out = jax.block_until_ready(fwd(src, params))
    ref = jax.block_until_ready(reference(src, params))

    # tolerance slightly relaxed vs 1e-4 because the in-kernel softmax uses the
    # EUP approximate reciprocal (per perf review); everything else is exact f32.
    np.testing.assert_allclose(np.asarray(out), np.asarray(ref),
                               atol=2e-3, rtol=2e-3)

    print("KERNEL_OK")
</pallas_src>

<mosaic_0001>
module attributes {stable_mosaic.version = 11 : i64} {
  func.func @encoder_layer_kernel(%arg0: memref<16x32xf32, #tpu.memory_space<vmem>>, %arg1: memref<32x96xf32, #tpu.memory_space<vmem>>, %arg2: memref<32x32xf32, #tpu.memory_space<vmem>>, %arg3: memref<32x64xf32, #tpu.memory_space<vmem>>, %arg4: memref<64x32xf32, #tpu.memory_space<vmem>>, %arg5: memref<12x96xf32, #tpu.memory_space<vmem>>, %arg6: memref<16x16xf32, #tpu.memory_space<vmem>>, %arg7: memref<4x128xf32, #tpu.memory_space<vmem>>) attributes {dimension_semantics = [], scalar_prefetch = 0 : i64, scratch_operands = 0 : i64, tpu.core_type = #tpu.core_type<tc>} {
    %c0 = arith.constant 0 : index
    %c0_0 = arith.constant 0 : index
    %0 = vector.load %arg0[%c0, %c0_0] : memref<16x32xf32, #tpu.memory_space<vmem>>, vector<16x32xf32>
    %c0_1 = arith.constant 0 : index
    %c0_2 = arith.constant 0 : index
    %1 = vector.load %arg5[%c0_1, %c0_2] : memref<12x96xf32, #tpu.memory_space<vmem>>, vector<1x96xf32>
    %c1 = arith.constant 1 : index
    %c0_3 = arith.constant 0 : index
    %2 = vector.load %arg5[%c1, %c0_3] : memref<12x96xf32, #tpu.memory_space<vmem>>, vector<1x32xf32>
    %c2 = arith.constant 2 : index
    %c0_4 = arith.constant 0 : index
    %3 = vector.load %arg5[%c2, %c0_4] : memref<12x96xf32, #tpu.memory_space<vmem>>, vector<1x64xf32>
    %c3 = arith.constant 3 : index
    %c0_5 = arith.constant 0 : index
    %4 = vector.load %arg5[%c3, %c0_5] : memref<12x96xf32, #tpu.memory_space<vmem>>, vector<1x32xf32>
    %c4 = arith.constant 4 : index
    %c0_6 = arith.constant 0 : index
    %5 = vector.load %arg5[%c4, %c0_6] : memref<12x96xf32, #tpu.memory_space<vmem>>, vector<1x32xf32>
    %c5 = arith.constant 5 : index
    %c0_7 = arith.constant 0 : index
    %6 = vector.load %arg5[%c5, %c0_7] : memref<12x96xf32, #tpu.memory_space<vmem>>, vector<1x32xf32>
    %c6 = arith.constant 6 : index
    %c0_8 = arith.constant 0 : index
    %7 = vector.load %arg5[%c6, %c0_8] : memref<12x96xf32, #tpu.memory_space<vmem>>, vector<1x32xf32>
    %c7 = arith.constant 7 : index
    %c0_9 = arith.constant 0 : index
    %8 = vector.load %arg5[%c7, %c0_9] : memref<12x96xf32, #tpu.memory_space<vmem>>, vector<1x32xf32>
    %c0_10 = arith.constant 0 : index
    %c0_11 = arith.constant 0 : index
    %9 = vector.load %arg1[%c0_10, %c0_11] : memref<32x96xf32, #tpu.memory_space<vmem>>, vector<32x96xf32>
    %cst = arith.constant dense<0.000000e+00> : vector<16x96xf32>
    %10 = tpu.matmul %0, %9, %cst {dimension_numbers = #tpu.dot_dimension_numbers<[1], [0], [0], [1], [0, 0, 1, 1], [], []>} : vector<16x32xf32>, vector<32x96xf32>, vector<16x96xf32> -> vector<16x96xf32>
    %11 = vector.broadcast %1 : vector<1x96xf32> to vector<16x96xf32>
    %12 = arith.addf %10, %11 : vector<16x96xf32>
    %13 = vector.extract_strided_slice %12 {offsets = [0, 0], sizes = [16, 32], strides = [1, 1]} : vector<16x96xf32> to vector<16x32xf32>
    %cst_12 = arith.constant 0.353553385 : f32
    %14 = vector.broadcast %cst_12 : f32 to vector<16x32xf32>
    %15 = arith.mulf %13, %14 : vector<16x32xf32>
    %16 = vector.extract_strided_slice %12 {offsets = [0, 32], sizes = [16, 32], strides = [1, 1]} : vector<16x96xf32> to vector<16x32xf32>
    %17 = vector.extract_strided_slice %12 {offsets = [0, 64], sizes = [16, 32], strides = [1, 1]} : vector<16x96xf32> to vector<16x32xf32>
    %c0_13 = arith.constant 0 : index
    %c0_14 = arith.constant 0 : index
    %18 = vector.load %arg6[%c0_13, %c0_14] : memref<16x16xf32, #tpu.memory_space<vmem>>, vector<16x16xf32>
    %cst_15 = arith.constant 0.000000e+00 : f32
    %19 = vector.broadcast %cst_15 : f32 to vector<16x32xf32>
    %c8 = arith.constant 8 : index
    %c0_16 = arith.constant 0 : index
    %20 = vector.load %arg5[%c8, %c0_16] : memref<12x96xf32, #tpu.memory_space<vmem>>, vector<1x32xf32>
    %21 = vector.broadcast %20 : vector<1x32xf32> to vector<16x32xf32>
    %22 = arith.mulf %15, %21 : vector<16x32xf32>
    %cst_17 = arith.constant dense<0.000000e+00> : vector<16x16xf32>
    %23 = tpu.matmul %22, %16, %cst_17 {dimension_numbers = #tpu.dot_dimension_numbers<[1], [1], [0], [0], [0, 0, 1, 0], [], []>} : vector<16x32xf32>, vector<16x32xf32>, vector<16x16xf32> -> vector<16x16xf32>
    %24 = arith.addf %23, %18 : vector<16x16xf32>
    %cst_18 = arith.constant dense<0xFF800000> : vector<16xf32>
    %25 = vector.multi_reduction <maximumf>, %24, %cst_18 [1] : vector<16x16xf32> to vector<16xf32>
    %26 = vector.shape_cast %25 : vector<16xf32> to vector<16x1xf32>
    %27 = vector.broadcast %26 : vector<16x1xf32> to vector<16x16xf32>
    %28 = arith.subf %24, %27 : vector<16x16xf32>
    %29 = math.exp %28 : vector<16x16xf32>
    %cst_19 = arith.constant dense<0.000000e+00> : vector<16xf32>
    %30 = vector.multi_reduction <add>, %29, %cst_19 [1] : vector<16x16xf32> to vector<16xf32>
    %31 = vector.shape_cast %30 : vector<16xf32> to vector<16x1xf32>
    %32 = tpu.reciprocal %31 {approx = true} : vector<16x1xf32> -> vector<16x1xf32>
    %33 = vector.broadcast %32 : vector<16x1xf32> to vector<16x16xf32>
    %34 = arith.mulf %29, %33 : vector<16x16xf32>
    %35 = vector.broadcast %20 : vector<1x32xf32> to vector<16x32xf32>
    %36 = arith.mulf %17, %35 : vector<16x32xf32>
    %cst_20 = arith.constant dense<0.000000e+00> : vector<16x32xf32>
    %37 = tpu.matmul %34, %36, %cst_20 {dimension_numbers = #tpu.dot_dimension_numbers<[1], [0], [0], [1], [0, 0, 1, 1], [], []>} : vector<16x16xf32>, vector<16x32xf32>, vector<16x32xf32> -> vector<16x32xf32>
    %38 = arith.addf %19, %37 : vector<16x32xf32>
    %c9 = arith.constant 9 : index
    %c0_21 = arith.constant 0 : index
    %39 = vector.load %arg5[%c9, %c0_21] : memref<12x96xf32, #tpu.memory_space<vmem>>, vector<1x32xf32>
    %40 = vector.broadcast %39 : vector<1x32xf32> to vector<16x32xf32>
    %41 = arith.mulf %15, %40 : vector<16x32xf32>
    %cst_22 = arith.constant dense<0.000000e+00> : vector<16x16xf32>
    %42 = tpu.matmul %41, %16, %cst_22 {dimension_numbers = #tpu.dot_dimension_numbers<[1], [1], [0], [0], [0, 0, 1, 0], [], []>} : vector<16x32xf32>, vector<16x32xf32>, vector<16x16xf32> -> vector<16x16xf32>
    %43 = arith.addf %42, %18 : vector<16x16xf32>
    %cst_23 = arith.constant dense<0xFF800000> : vector<16xf32>
    %44 = vector.multi_reduction <maximumf>, %43, %cst_23 [1] : vector<16x16xf32> to vector<16xf32>
    %45 = vector.shape_cast %44 : vector<16xf32> to vector<16x1xf32>
    %46 = vector.broadcast %45 : vector<16x1xf32> to vector<16x16xf32>
    %47 = arith.subf %43, %46 : vector<16x16xf32>
    %48 = math.exp %47 : vector<16x16xf32>
    %cst_24 = arith.constant dense<0.000000e+00> : vector<16xf32>
    %49 = vector.multi_reduction <add>, %48, %cst_24 [1] : vector<16x16xf32> to vector<16xf32>
    %50 = vector.shape_cast %49 : vector<16xf32> to vector<16x1xf32>
    %51 = tpu.reciprocal %50 {approx = true} : vector<16x1xf32> -> vector<16x1xf32>
    %52 = vector.broadcast %51 : vector<16x1xf32> to vector<16x16xf32>
    %53 = arith.mulf %48, %52 : vector<16x16xf32>
    %54 = vector.broadcast %39 : vector<1x32xf32> to vector<16x32xf32>
    %55 = arith.mulf %17, %54 : vector<16x32xf32>
    %cst_25 = arith.constant dense<0.000000e+00> : vector<16x32xf32>
    %56 = tpu.matmul %53, %55, %cst_25 {dimension_numbers = #tpu.dot_dimension_numbers<[1], [0], [0], [1], [0, 0, 1, 1], [], []>} : vector<16x16xf32>, vector<16x32xf32>, vector<16x32xf32> -> vector<16x32xf32>
    %57 = arith.addf %38, %56 : vector<16x32xf32>
    %c10 = arith.constant 10 : index
    %c0_26 = arith.constant 0 : index
    %58 = vector.load %arg5[%c10, %c0_26] : memref<12x96xf32, #tpu.memory_space<vmem>>, vector<1x32xf32>
    %59 = vector.broadcast %58 : vector<1x32xf32> to vector<16x32xf32>
    %60 = arith.mulf %15, %59 : vector<16x32xf32>
    %cst_27 = arith.constant dense<0.000000e+00> : vector<16x16xf32>
    %61 = tpu.matmul %60, %16, %cst_27 {dimension_numbers = #tpu.dot_dimension_numbers<[1], [1], [0], [0], [0, 0, 1, 0], [], []>} : vector<16x32xf32>, vector<16x32xf32>, vector<16x16xf32> -> vector<16x16xf32>
    %62 = arith.addf %61, %18 : vector<16x16xf32>
    %cst_28 = arith.constant dense<0xFF800000> : vector<16xf32>
    %63 = vector.multi_reduction <maximumf>, %62, %cst_28 [1] : vector<16x16xf32> to vector<16xf32>
    %64 = vector.shape_cast %63 : vector<16xf32> to vector<16x1xf32>
    %65 = vector.broadcast %64 : vector<16x1xf32> to vector<16x16xf32>
    %66 = arith.subf %62, %65 : vector<16x16xf32>
    %67 = math.exp %66 : vector<16x16xf32>
    %cst_29 = arith.constant dense<0.000000e+00> : vector<16xf32>
    %68 = vector.multi_reduction <add>, %67, %cst_29 [1] : vector<16x16xf32> to vector<16xf32>
    %69 = vector.shape_cast %68 : vector<16xf32> to vector<16x1xf32>
    %70 = tpu.reciprocal %69 {approx = true} : vector<16x1xf32> -> vector<16x1xf32>
    %71 = vector.broadcast %70 : vector<16x1xf32> to vector<16x16xf32>
    %72 = arith.mulf %67, %71 : vector<16x16xf32>
    %73 = vector.broadcast %58 : vector<1x32xf32> to vector<16x32xf32>
    %74 = arith.mulf %17, %73 : vector<16x32xf32>
    %cst_30 = arith.constant dense<0.000000e+00> : vector<16x32xf32>
    %75 = tpu.matmul %72, %74, %cst_30 {dimension_numbers = #tpu.dot_dimension_numbers<[1], [0], [0], [1], [0, 0, 1, 1], [], []>} : vector<16x16xf32>, vector<16x32xf32>, vector<16x32xf32> -> vector<16x32xf32>
    %76 = arith.addf %57, %75 : vector<16x32xf32>
    %c11 = arith.constant 11 : index
    %c0_31 = arith.constant 0 : index
    %77 = vector.load %arg5[%c11, %c0_31] : memref<12x96xf32, #tpu.memory_space<vmem>>, vector<1x32xf32>
    %78 = vector.broadcast %77 : vector<1x32xf32> to vector<16x32xf32>
    %79 = arith.mulf %15, %78 : vector<16x32xf32>
    %cst_32 = arith.constant dense<0.000000e+00> : vector<16x16xf32>
    %80 = tpu.matmul %79, %16, %cst_32 {dimension_numbers = #tpu.dot_dimension_numbers<[1], [1], [0], [0], [0, 0, 1, 0], [], []>} : vector<16x32xf32>, vector<16x32xf32>, vector<16x16xf32> -> vector<16x16xf32>
    %81 = arith.addf %80, %18 : vector<16x16xf32>
    %cst_33 = arith.constant dense<0xFF800000> : vector<16xf32>
    %82 = vector.multi_reduction <maximumf>, %81, %cst_33 [1] : vector<16x16xf32> to vector<16xf32>
    %83 = vector.shape_cast %82 : vector<16xf32> to vector<16x1xf32>
    %84 = vector.broadcast %83 : vector<16x1xf32> to vector<16x16xf32>
    %85 = arith.subf %81, %84 : vector<16x16xf32>
    %86 = math.exp %85 : vector<16x16xf32>
    %cst_34 = arith.constant dense<0.000000e+00> : vector<16xf32>
    %87 = vector.multi_reduction <add>, %86, %cst_34 [1] : vector<16x16xf32> to vector<16xf32>
    %88 = vector.shape_cast %87 : vector<16xf32> to vector<16x1xf32>
    %89 = tpu.reciprocal %88 {approx = true} : vector<16x1xf32> -> vector<16x1xf32>
    %90 = vector.broadcast %89 : vector<16x1xf32> to vector<16x16xf32>
    %91 = arith.mulf %86, %90 : vector<16x16xf32>
    %92 = vector.broadcast %77 : vector<1x32xf32> to vector<16x32xf32>
    %93 = arith.mulf %17, %92 : vector<16x32xf32>
    %cst_35 = arith.constant dense<0.000000e+00> : vector<16x32xf32>
    %94 = tpu.matmul %91, %93, %cst_35 {dimension_numbers = #tpu.dot_dimension_numbers<[1], [0], [0], [1], [0, 0, 1, 1], [], []>} : vector<16x16xf32>, vector<16x32xf32>, vector<16x32xf32> -> vector<16x32xf32>
    %95 = arith.addf %76, %94 : vector<16x32xf32>
    %c0_36 = arith.constant 0 : index
    %c0_37 = arith.constant 0 : index
    %96 = vector.load %arg2[%c0_36, %c0_37] : memref<32x32xf32, #tpu.memory_space<vmem>>, vector<32x32xf32>
    %cst_38 = arith.constant dense<0.000000e+00> : vector<16x32xf32>
    %97 = tpu.matmul %95, %96, %cst_38 {dimension_numbers = #tpu.dot_dimension_numbers<[1], [0], [0], [1], [0, 0, 1, 1], [], []>} : vector<16x32xf32>, vector<32x32xf32>, vector<16x32xf32> -> vector<16x32xf32>
    %98 = vector.broadcast %2 : vector<1x32xf32> to vector<16x32xf32>
    %99 = arith.addf %97, %98 : vector<16x32xf32>
    %100 = arith.addf %0, %99 : vector<16x32xf32>
    %cst_39 = arith.constant dense<0.000000e+00> : vector<16xf32>
    %101 = vector.multi_reduction <add>, %100, %cst_39 [1] : vector<16x32xf32> to vector<16xf32>
    %102 = vector.shape_cast %101 : vector<16xf32> to vector<16x1xf32>
    %cst_40 = arith.constant 3.200000e+01 : f32
    %103 = vector.broadcast %cst_40 : f32 to vector<16x1xf32>
    %104 = arith.divf %102, %103 : vector<16x1xf32>
    %105 = vector.broadcast %104 : vector<16x1xf32> to vector<16x32xf32>
    %106 = arith.subf %100, %105 : vector<16x32xf32>
    %107 = arith.mulf %106, %106 : vector<16x32xf32>
    %cst_41 = arith.constant dense<0.000000e+00> : vector<16xf32>
    %108 = vector.multi_reduction <add>, %107, %cst_41 [1] : vector<16x32xf32> to vector<16xf32>
    %109 = vector.shape_cast %108 : vector<16xf32> to vector<16x1xf32>
    %cst_42 = arith.constant 3.200000e+01 : f32
    %110 = vector.broadcast %cst_42 : f32 to vector<16x1xf32>
    %111 = arith.divf %109, %110 : vector<16x1xf32>
    %112 = vector.broadcast %104 : vector<16x1xf32> to vector<16x32xf32>
    %113 = arith.subf %100, %112 : vector<16x32xf32>
    %cst_43 = arith.constant 9.99999974E-6 : f32
    %114 = vector.broadcast %cst_43 : f32 to vector<16x1xf32>
    %115 = arith.addf %111, %114 : vector<16x1xf32>
    %116 = math.rsqrt %115 : vector<16x1xf32>
    %117 = vector.broadcast %116 : vector<16x1xf32> to vector<16x32xf32>
    %118 = arith.mulf %113, %117 : vector<16x32xf32>
    %119 = vector.broadcast %5 : vector<1x32xf32> to vector<16x32xf32>
    %120 = arith.mulf %118, %119 : vector<16x32xf32>
    %121 = vector.broadcast %6 : vector<1x32xf32> to vector<16x32xf32>
    %122 = arith.addf %120, %121 : vector<16x32xf32>
    %c0_44 = arith.constant 0 : index
    %c0_45 = arith.constant 0 : index
    %123 = vector.load %arg3[%c0_44, %c0_45] : memref<32x64xf32, #tpu.memory_space<vmem>>, vector<32x64xf32>
    %cst_46 = arith.constant dense<0.000000e+00> : vector<16x64xf32>
    %124 = tpu.matmul %122, %123, %cst_46 {dimension_numbers = #tpu.dot_dimension_numbers<[1], [0], [0], [1], [0, 0, 1, 1], [], []>} : vector<16x32xf32>, vector<32x64xf32>, vector<16x64xf32> -> vector<16x64xf32>
    %125 = vector.broadcast %3 : vector<1x64xf32> to vector<16x64xf32>
    %126 = arith.addf %124, %125 : vector<16x64xf32>
    %cst_47 = arith.constant 0.000000e+00 : f32
    %127 = vector.broadcast %cst_47 : f32 to vector<16x64xf32>
    %128 = arith.maximumf %126, %127 : vector<16x64xf32>
    %c0_48 = arith.constant 0 : index
    %c0_49 = arith.constant 0 : index
    %129 = vector.load %arg4[%c0_48, %c0_49] : memref<64x32xf32, #tpu.memory_space<vmem>>, vector<64x32xf32>
    %cst_50 = arith.constant dense<0.000000e+00> : vector<16x32xf32>
    %130 = tpu.matmul %128, %129, %cst_50 {dimension_numbers = #tpu.dot_dimension_numbers<[1], [0], [0], [1], [0, 0, 1, 1], [], []>} : vector<16x64xf32>, vector<64x32xf32>, vector<16x32xf32> -> vector<16x32xf32>
    %131 = vector.broadcast %4 : vector<1x32xf32> to vector<16x32xf32>
    %132 = arith.addf %130, %131 : vector<16x32xf32>
    %133 = arith.addf %122, %132 : vector<16x32xf32>
    %cst_51 = arith.constant dense<0.000000e+00> : vector<16xf32>
    %134 = vector.multi_reduction <add>, %133, %cst_51 [1] : vector<16x32xf32> to vector<16xf32>
    %135 = vector.shape_cast %134 : vector<16xf32> to vector<16x1xf32>
    %cst_52 = arith.constant 3.200000e+01 : f32
    %136 = vector.broadcast %cst_52 : f32 to vector<16x1xf32>
    %137 = arith.divf %135, %136 : vector<16x1xf32>
    %138 = vector.broadcast %137 : vector<16x1xf32> to vector<16x32xf32>
    %139 = arith.subf %133, %138 : vector<16x32xf32>
    %140 = arith.mulf %139, %139 : vector<16x32xf32>
    %cst_53 = arith.constant dense<0.000000e+00> : vector<16xf32>
    %141 = vector.multi_reduction <add>, %140, %cst_53 [1] : vector<16x32xf32> to vector<16xf32>
    %142 = vector.shape_cast %141 : vector<16xf32> to vector<16x1xf32>
    %cst_54 = arith.constant 3.200000e+01 : f32
    %143 = vector.broadcast %cst_54 : f32 to vector<16x1xf32>
    %144 = arith.divf %142, %143 : vector<16x1xf32>
    %145 = vector.broadcast %137 : vector<16x1xf32> to vector<16x32xf32>
    %146 = arith.subf %133, %145 : vector<16x32xf32>
    %cst_55 = arith.constant 9.99999974E-6 : f32
    %147 = vector.broadcast %cst_55 : f32 to vector<16x1xf32>
    %148 = arith.addf %144, %147 : vector<16x1xf32>
    %149 = math.rsqrt %148 : vector<16x1xf32>
    %150 = vector.broadcast %149 : vector<16x1xf32> to vector<16x32xf32>
    %151 = arith.mulf %146, %150 : vector<16x32xf32>
    %152 = vector.broadcast %7 : vector<1x32xf32> to vector<16x32xf32>
    %153 = arith.mulf %151, %152 : vector<16x32xf32>
    %154 = vector.broadcast %8 : vector<1x32xf32> to vector<16x32xf32>
    %155 = arith.addf %153, %154 : vector<16x32xf32>
    %156 = vector.extract_strided_slice %155 {offsets = [0, 0], sizes = [4, 32], strides = [1, 1]} : vector<16x32xf32> to vector<4x32xf32>
    %157 = vector.extract_strided_slice %155 {offsets = [4, 0], sizes = [4, 32], strides = [1, 1]} : vector<16x32xf32> to vector<4x32xf32>
    %158 = vector.extract_strided_slice %155 {offsets = [8, 0], sizes = [4, 32], strides = [1, 1]} : vector<16x32xf32> to vector<4x32xf32>
    %159 = vector.extract_strided_slice %155 {offsets = [12, 0], sizes = [4, 32], strides = [1, 1]} : vector<16x32xf32> to vector<4x32xf32>
    %160 = tpu.concatenate %156, %157, %158, %159 in 1 : vector<4x32xf32>, vector<4x32xf32>, vector<4x32xf32>, vector<4x32xf32> -> vector<4x128xf32>
    %c0_56 = arith.constant 0 : index
    %c0_57 = arith.constant 0 : index
    %161 = vector.load %arg7[%c0_56, %c0_57] : memref<4x128xf32, #tpu.memory_space<vmem>>, vector<4x128xf32>
    tpu.vector_store %arg7[%c0_56, %c0_57], %160 {strides = array<i32>} : memref<4x128xf32, #tpu.memory_space<vmem>>, vector<4x128xf32>,
    return
  }
}

</mosaic_0001>

<llo_original>
// kernel: transformer_encoder_layer.1
$region0: #{transformer_encoder_layer.1}
  #allocation0 [shape = 'u32[]', space=smem, size = 0x4, offset = 0x4, fixed_abs, tag = 'smem constant byte address 0x4 - core index']
  #allocation1 [shape = 'u32[144,128]{1,0:T(1,128)}', space=vmem, size = 0x12000, scoped, tag = 'internal scratch']
  %s0 = inlined_call_operand.vmem [shape: f32[16,32], index: 0, kind: input, shape index: {}]
  %s1 = inlined_call_operand.vmem [shape: f32[32,96], index: 1, kind: input, shape index: {}]
  %s2 = inlined_call_operand.vmem [shape: f32[32,32], index: 2, kind: input, shape index: {}]
  %s3 = inlined_call_operand.vmem [shape: f32[32,64], index: 3, kind: input, shape index: {}]
  %s4 = inlined_call_operand.vmem [shape: f32[64,32], index: 4, kind: input, shape index: {}]
  %s5 = inlined_call_operand.vmem [shape: f32[12,96], index: 5, kind: input, shape index: {}]
  %s6 = inlined_call_operand.vmem [shape: f32[16,16], index: 6, kind: input, shape index: {}]
  %s7 = inlined_call_operand.vmem [shape: f32[4,128], index: 7, kind: output, shape index: {}]
  %s8 = sld [smem:[#allocation0]]
  $region38: #{transformer_encoder_layer.1} parent=0
    _
  %s10 = ssub.s32 1, %s8
  %s11 = scalar_select 0, %s10, %s8
  // Predicated region
  $region2: #{transformer_encoder_layer.1} parent=0 // pred_check
    _
  $region3: #{transformer_encoder_layer.1} parent=0 // pred_check_branch
    %13 = sbr.rel (0) target = $region5
  $region4: #{transformer_encoder_layer.1} parent=0 // pred_region
    _
  $region5: #{transformer_encoder_layer.1} parent=0 // pred_fallthru
    _
  // Predicated region
  $region6: #{transformer_encoder_layer.1} parent=0 // pred_check
    _
  $region7: #{transformer_encoder_layer.1} parent=0 // pred_check_branch
    %15 = sbr.rel (0) target = $region9
  $region8: #{transformer_encoder_layer.1} parent=0 // pred_region
    _
  $region9: #{transformer_encoder_layer.1} parent=0 // pred_fallthru
    _
  // Predicated region
  $region10: #{transformer_encoder_layer.1} parent=0 // pred_check
    _
  $region11: #{transformer_encoder_layer.1} parent=0 // pred_check_branch
    %17 = sbr.rel (0) target = $region13
  $region12: #{transformer_encoder_layer.1} parent=0 // pred_region
    _
  $region13: #{transformer_encoder_layer.1} parent=0 // pred_fallthru
    _
  // Predicated region
  $region14: #{transformer_encoder_layer.1} parent=0 // pred_check
    _
  $region15: #{transformer_encoder_layer.1} parent=0 // pred_check_branch
    %19 = sbr.rel (0) target = $region17
  $region16: #{transformer_encoder_layer.1} parent=0 // pred_region
    _
  $region17: #{transformer_encoder_layer.1} parent=0 // pred_fallthru
    _
  // Predicated region
  $region18: #{transformer_encoder_layer.1} parent=0 // pred_check
    _
  $region19: #{transformer_encoder_layer.1} parent=0 // pred_check_branch
    %21 = sbr.rel (0) target = $region21
  $region20: #{transformer_encoder_layer.1} parent=0 // pred_region
    _
  $region21: #{transformer_encoder_layer.1} parent=0 // pred_fallthru
    _
  // Predicated region
  $region22: #{transformer_encoder_layer.1} parent=0 // pred_check
    _
  $region23: #{transformer_encoder_layer.1} parent=0 // pred_check_branch
    %23 = sbr.rel (0) target = $region25
  $region24: #{transformer_encoder_layer.1} parent=0 // pred_region
    _
  $region25: #{transformer_encoder_layer.1} parent=0 // pred_fallthru
    _
  // Predicated region
  $region26: #{transformer_encoder_layer.1} parent=0 // pred_check
    _
  $region27: #{transformer_encoder_layer.1} parent=0 // pred_check_branch
    %25 = sbr.rel (0) target = $region29
  $region28: #{transformer_encoder_layer.1} parent=0 // pred_region
    _
  $region29: #{transformer_encoder_layer.1} parent=0 // pred_fallthru
    _
  %v26 = vld [vmem:[%s0] sm:$0xff]
  %v27 = vld [vmem:[%s0 + $0x8] sm:$0xff]
  %v28 = vld [vmem:[%s5] sm:$0x1]
  %v29 = vld [vmem:[%s5 + $0x1] sm:$0x1]
  %v30 = vld [vmem:[%s5 + $0x2] sm:$0x1]
  %v31 = vld [vmem:[%s5 + $0x3] sm:$0x1]
  %v32 = vld [vmem:[%s5 + $0x4] sm:$0x1]
  %v33 = vld [vmem:[%s5 + $0x5] sm:$0x1]
  %v34 = vld [vmem:[%s5 + $0x6] sm:$0x1]
  %v35 = vld [vmem:[%s5 + $0x7] sm:$0x1]
  %v36 = vld [vmem:[%s1] sm:$0xff]
  %v37 = vld [vmem:[%s1 + $0x8] sm:$0xff]
  %v38 = vld [vmem:[%s1 + $0x10] sm:$0xff]
  %v39 = vld [vmem:[%s1 + $0x18] sm:$0xff]
  %v40 = vlaneseq
  %v41 = vshrl.u32 %v40, 7
  %v42 = vsub.s32 0, %v41
  %v43 = vrot.slane %v28, %v42
  %vm44 = vcmask 261120
  %v46 = vsel %vm44, %v26, 0
  %v49 = vsel %vm44, %v27, 0
  %51 = vmatprep.subr.mxu0 0.0
  %52 = vmatpush1.msra.mxu0 %v36
  %53 = vmatprep.subr.mxu0 0.0
  %54 = vmatpush1.msra.mxu0 %v37
  %55 = vmatprep.subr.mxu0 0.0
  %56 = vmatpush1.msra.mxu0 %v38
  %57 = vmatprep.subr.mxu0 0.0
  %58 = vmatpush1.msra.mxu0 %v39
  %59 = vmatprep.subr.mxu0 0.0
  %60 = vmatpush1.msra.mxu0 0.0
  %61 = vmatprep.subr.mxu0 0.0
  %62 = vmatpush1.msra.mxu0 0.0
  %63 = vmatprep.subr.mxu0 0.0
  %64 = vmatpush1.msra.mxu0 0.0
  %65 = vmatprep.subr.mxu0 0.0
  %66 = vmatpush1.msra.mxu0 0.0
  %67 = vmatprep.subr.mxu0 0.0
  %68 = vmatpush1.msra.mxu0 0.0
  %69 = vmatprep.subr.mxu0 0.0
  %70 = vmatpush1.msra.mxu0 0.0
  %71 = vmatprep.subr.mxu0 0.0
  %72 = vmatpush1.msra.mxu0 0.0
  %73 = vmatprep.subr.mxu0 0.0
  %74 = vmatpush1.msra.mxu0 0.0
  %75 = vmatprep.subr.mxu0 0.0
  %76 = vmatpush1.msra.mxu0 0.0
  %77 = vmatprep.subr.mxu0 0.0
  %78 = vmatpush1.msra.mxu0 0.0
  %79 = vmatprep.subr.mxu0 0.0
  %80 = vmatpush1.msra.mxu0 0.0
  %81 = vmatprep.subr.mxu0 0.0
  %82 = vmatpush1.msra.mxu0 0.0
  %83 = vmatprep.subr.mxu0 0.0
  %84 = vmatpush1.msra.mxu0 0.0
  %85 = vmatprep.subr.mxu0 0.0
  %86 = vmatpush1.msra.mxu0 0.0
  %87 = vmatprep.subr.mxu0 0.0
  %88 = vmatpush1.msra.mxu0 0.0
  %89 = vmatprep.subr.mxu0 0.0
  %90 = vmatpush1.msra.mxu0 0.0
  %91 = vmatprep.subr.mxu0 0.0
  %92 = vmatpush1.msra.mxu0 0.0
  %93 = vmatprep.subr.mxu0 0.0
  %94 = vmatpush1.msra.mxu0 0.0
  %95 = vmatprep.subr.mxu0 0.0
  %96 = vmatpush1.msra.mxu0 0.0
  %97 = vmatprep.subr.mxu0 0.0
  %98 = vmatpush1.msra.mxu0 0.0
  %99 = vmatprep.subr.mxu0 0.0
  %100 = vmatpush1.msra.mxu0 0.0
  %101 = vmatprep.subr.mxu0 0.0
  %102 = vmatpush1.msra.mxu0 0.0
  %103 = vmatprep.subr.mxu0 0.0
  %104 = vmatpush1.msra.mxu0 0.0
  %105 = vmatprep.subr.mxu0 0.0
  %106 = vmatpush1.msra.mxu0 0.0
  %107 = vmatprep.subr.mxu0 0.0
  %108 = vmatpush1.msra.mxu0 0.0
  %109 = vmatprep.subr.mxu0 0.0
  %110 = vmatpush1.msra.mxu0 0.0
  %111 = vmatprep.subr.mxu0 0.0
  %112 = vmatpush1.msra.mxu0 0.0
  %113 = vmatprep.subr.mxu0 0.0
  %114 = vmatpush1.msra.mxu0 0.0
  %115 = vmatprep.mubr.f32.mxu0 0.0
  %116 = vmatmul.mubr.f32.gmra.mrb[0].mxu0 %v46
  %v117 = vpop.f32.mrb[0].mxu0
  %v118 = vadd.f32 %v43, %v117
  %v119 = vpop.f32.mrb[0].mxu0
  %120 = vmatprep.mubr.f32.mxu0 0.0
  %121 = vmatmul.mubr.f32.gmra.mrb[0].mxu0 %v49
  %v122 = vpop.f32.mrb[0].mxu0
  %v123 = vadd.f32 %v43, %v122
  %v124 = vpop.f32.mrb[0].mxu0
  %125 = vdwg.mxu0
  %v126 = vmul.f32 %v118, 0.35355338
  %v127 = vmul.f32 %v123, 0.35355338
  %v128 = vld [vmem:[%s6] sm:$0xff]
  %v129 = vld [vmem:[%s6 + $0x8] sm:$0xff]
  %v130 = vld [vmem:[%s5 + $0x8] sm:$0x1]
  %v131 = vlaneseq
  %v132 = vshrl.u32 %v131, 7
  %v133 = vsub.s32 0, %v132
  %v134 = vrot.slane %v130, %v133
  %v135 = vmul.f32 %v126, %v134
  %v136 = vmul.f32 %v127, %v134
  %139 = vrot.lane.b32.xlu0 %v118, 96
  %v140 = vpop.permute.xlu0 %139
  %141 = vrot.lane.b32.xlu0 %v123, 96
  %v142 = vpop.permute.xlu0 %141
  %v144 = vsel %vm44, %v135, 0
  %v147 = vsel %vm44, %v136, 0
  %v149 = vsel %vm44, %v140, 0
  %v151 = vsel %vm44, %v142, 0
  %153 = vmatprep.subr.mxu0 0.0
  %154 = vmatpush1.xpose.msra.mxu0 %v149
  %155 = vmatprep.subr.mxu0 0.0
  %156 = vmatpush1.xpose.msra.mxu0 %v151
  %157 = vmatprep.subr.mxu0 0.0
  %158 = vmatpush1.xpose.msra.mxu0 0.0
  %159 = vmatprep.subr.mxu0 0.0
  %160 = vmatpush1.xpose.msra.mxu0 0.0
  %161 = vmatprep.subr.mxu0 0.0
  %162 = vmatpush1.xpose.msra.mxu0 0.0
  %163 = vmatprep.subr.mxu0 0.0
  %164 = vmatpush1.xpose.msra.mxu0 0.0
  %165 = vmatprep.subr.mxu0 0.0
  %166 = vmatpush1.xpose.msra.mxu0 0.0
  %167 = vmatprep.subr.mxu0 0.0
  %168 = vmatpush1.xpose.msra.mxu0 0.0
  %169 = vmatprep.subr.mxu0 0.0
  %170 = vmatpush1.xpose.msra.mxu0 0.0
  %171 = vmatprep.subr.mxu0 0.0
  %172 = vmatpush1.xpose.msra.mxu0 0.0
  %173 = vmatprep.subr.mxu0 0.0
  %174 = vmatpush1.xpose.msra.mxu0 0.0
  %175 = vmatprep.subr.mxu0 0.0
  %176 = vmatpush1.xpose.msra.mxu0 0.0
  %177 = vmatprep.subr.mxu0 0.0
  %178 = vmatpush1.xpose.msra.mxu0 0.0
  %179 = vmatprep.subr.mxu0 0.0
  %180 = vmatpush1.xpose.msra.mxu0 0.0
  %181 = vmatprep.subr.mxu0 0.0
  %182 = vmatpush1.xpose.msra.mxu0 0.0
  %183 = vmatprep.subr.mxu0 0.0
  %184 = vmatpush1.xpose.msra.mxu0 0.0
  %185 = vmatprep.subr.mxu0 0.0
  %186 = vmatpush1.xpose.msra.mxu0 0.0
  %187 = vmatprep.subr.mxu0 0.0
  %188 = vmatpush1.xpose.msra.mxu0 0.0
  %189 = vmatprep.subr.mxu0 0.0
  %190 = vmatpush1.xpose.msra.mxu0 0.0
  %191 = vmatprep.subr.mxu0 0.0
  %192 = vmatpush1.xpose.msra.mxu0 0.0
  %193 = vmatprep.subr.mxu0 0.0
  %194 = vmatpush1.xpose.msra.mxu0 0.0
  %195 = vmatprep.subr.mxu0 0.0
  %196 = vmatpush1.xpose.msra.mxu0 0.0
  %197 = vmatprep.subr.mxu0 0.0
  %198 = vmatpush1.xpose.msra.mxu0 0.0
  %199 = vmatprep.subr.mxu0 0.0
  %200 = vmatpush1.xpose.msra.mxu0 0.0
  %201 = vmatprep.subr.mxu0 0.0
  %202 = vmatpush1.xpose.msra.mxu0 0.0
  %203 = vmatprep.subr.mxu0 0.0
  %204 = vmatpush1.xpose.msra.mxu0 0.0
  %205 = vmatprep.subr.mxu0 0.0
  %206 = vmatpush1.xpose.msra.mxu0 0.0
  %207 = vmatprep.subr.mxu0 0.0
  %208 = vmatpush1.xpose.msra.mxu0 0.0
  %209 = vmatprep.subr.mxu0 0.0
  %210 = vmatpush1.xpose.msra.mxu0 0.0
  %211 = vmatprep.subr.mxu0 0.0
  %212 = vmatpush1.xpose.msra.mxu0 0.0
  %213 = vmatprep.subr.mxu0 0.0
  %214 = vmatpush1.xpose.msra.mxu0 0.0
  %215 = vmatprep.subr.mxu0 0.0
  %216 = vmatpush1.xpose.msra.mxu0 0.0
  %217 = vmatprep.mubr.f32.mxu0 0.0
  %218 = vmatmul.mubr.f32.gmra.mrb[0].mxu0 %v144
  %v219 = vpop.f32.mrb[0].mxu0
  %v220 = vadd.f32 %v128, %v219
  %v221 = vpop.f32.mrb[0].mxu0
  %222 = vmatprep.mubr.f32.mxu0 0.0
  %223 = vmatmul.mubr.f32.gmra.mrb[0].mxu0 %v147
  %v224 = vpop.f32.mrb[0].mxu0
  %v225 = vadd.f32 %v129, %v224
  %v226 = vpop.f32.mrb[0].mxu0
  %227 = vdwg.mxu0
  %vm228 = vcmask 130048
  %v229 = vsel %vm228, %v220, -inf
  %230 = vmax.xlane.f32.xlu0 %v229
  %v231 = vpop.xlane.xlu0 %230
  %v232 = vsel %vm228, %v225, -inf
  %233 = vmax.xlane.f32.xlu0 %v232
  %v234 = vpop.xlane.xlu0 %233
  %v235 = vsub.f32 %v220, %v231
  %v236 = vsub.f32 %v225, %v234
  %v237 = vmul.f32 %v235, 1.442695
  %v238 = vpow.pop %v237
  %v239 = vmul.f32 %v236, 1.442695
  %v240 = vpow.pop %v239
  %v241 = vsel %vm228, %v238, 0.0
  %242 = vadd.xlane.f32.xlu0 %v241
  %v243 = vpop.xlane.xlu0 %242
  %v244 = vsel %vm228, %v240, 0.0
  %245 = vadd.xlane.f32.xlu0 %v244
  %v246 = vpop.xlane.xlu0 %245
  %v247 = vrcp.pop %v243
  %v248 = vrcp.pop %v246
  %v249 = vmul.f32 %v238, %v247
  %v250 = vmul.f32 %v240, %v248
  %252 = vrot.lane.b32.xlu0 %v134, 64
  %v253 = vpop.permute.xlu0 %252
  %v255 = vmul.f32 %v118, %v253
  %v256 = vmul.f32 %v123, %v253
  %v257 = vld [vmem:[%s5 + $0x9] sm:$0x1]
  %v258 = vlaneseq
  %v259 = vshrl.u32 %v258, 7
  %v260 = vsub.s32 0, %v259
  %v261 = vrot.slane %v257, %v260
  %v262 = vmul.f32 %v126, %v261
  %v263 = vmul.f32 %v127, %v261
  %v265 = vsel %vm44, %v262, 0
  %v268 = vsel %vm44, %v263, 0
  %270 = vmatprep.subr.mxu0 0.0
  %271 = vmatpush1.xpose.msra.mxu0 %v149
  %272 = vmatprep.subr.mxu0 0.0
  %273 = vmatpush1.xpose.msra.mxu0 %v151
  %274 = vmatprep.subr.mxu0 0.0
  %275 = vmatpush1.xpose.msra.mxu0 0.0
  %276 = vmatprep.subr.mxu0 0.0
  %277 = vmatpush1.xpose.msra.mxu0 0.0
  %278 = vmatprep.subr.mxu0 0.0
  %279 = vmatpush1.xpose.msra.mxu0 0.0
  %280 = vmatprep.subr.mxu0 0.0
  %281 = vmatpush1.xpose.msra.mxu0 0.0
  %282 = vmatprep.subr.mxu0 0.0
  %283 = vmatpush1.xpose.msra.mxu0 0.0
  %284 = vmatprep.subr.mxu0 0.0
  %285 = vmatpush1.xpose.msra.mxu0 0.0
  %286 = vmatprep.subr.mxu0 0.0
  %287 = vmatpush1.xpose.msra.mxu0 0.0
  %288 = vmatprep.subr.mxu0 0.0
  %289 = vmatpush1.xpose.msra.mxu0 0.0
  %290 = vmatprep.subr.mxu0 0.0
  %291 = vmatpush1.xpose.msra.mxu0 0.0
  %292 = vmatprep.subr.mxu0 0.0
  %293 = vmatpush1.xpose.msra.mxu0 0.0
  %294 = vmatprep.subr.mxu0 0.0
  %295 = vmatpush1.xpose.msra.mxu0 0.0
  %296 = vmatprep.subr.mxu0 0.0
  %297 = vmatpush1.xpose.msra.mxu0 0.0
  %298 = vmatprep.subr.mxu0 0.0
  %299 = vmatpush1.xpose.msra.mxu0 0.0
  %300 = vmatprep.subr.mxu0 0.0
  %301 = vmatpush1.xpose.msra.mxu0 0.0
  %302 = vmatprep.subr.mxu0 0.0
  %303 = vmatpush1.xpose.msra.mxu0 0.0
  %304 = vmatprep.subr.mxu0 0.0
  %305 = vmatpush1.xpose.msra.mxu0 0.0
  %306 = vmatprep.subr.mxu0 0.0
  %307 = vmatpush1.xpose.msra.mxu0 0.0
  %308 = vmatprep.subr.mxu0 0.0
  %309 = vmatpush1.xpose.msra.mxu0 0.0
  %310 = vmatprep.subr.mxu0 0.0
  %311 = vmatpush1.xpose.msra.mxu0 0.0
  %312 = vmatprep.subr.mxu0 0.0
  %313 = vmatpush1.xpose.msra.mxu0 0.0
  %314 = vmatprep.subr.mxu0 0.0
  %315 = vmatpush1.xpose.msra.mxu0 0.0
  %316 = vmatprep.subr.mxu0 0.0
  %317 = vmatpush1.xpose.msra.mxu0 0.0
  %318 = vmatprep.subr.mxu0 0.0
  %319 = vmatpush1.xpose.msra.mxu0 0.0
  %320 = vmatprep.subr.mxu0 0.0
  %321 = vmatpush1.xpose.msra.mxu0 0.0
  %322 = vmatprep.subr.mxu0 0.0
  %323 = vmatpush1.xpose.msra.mxu0 0.0
  %324 = vmatprep.subr.mxu0 0.0
  %325 = vmatpush1.xpose.msra.mxu0 0.0
  %326 = vmatprep.subr.mxu0 0.0
  %327 = vmatpush1.xpose.msra.mxu0 0.0
  %328 = vmatprep.subr.mxu0 0.0
  %329 = vmatpush1.xpose.msra.mxu0 0.0
  %330 = vmatprep.subr.mxu0 0.0
  %331 = vmatpush1.xpose.msra.mxu0 0.0
  %332 = vmatprep.subr.mxu0 0.0
  %333 = vmatpush1.xpose.msra.mxu0 0.0
  %334 = vmatprep.mubr.f32.mxu0 0.0
  %335 = vmatmul.mubr.f32.gmra.mrb[0].mxu0 %v265
  %v336 = vpop.f32.mrb[0].mxu0
  %v337 = vadd.f32 %v128, %v336
  %v338 = vpop.f32.mrb[0].mxu0
  %339 = vmatprep.mubr.f32.mxu0 0.0
  %340 = vmatmul.mubr.f32.gmra.mrb[0].mxu0 %v268
  %v341 = vpop.f32.mrb[0].mxu0
  %v342 = vadd.f32 %v129, %v341
  %v343 = vpop.f32.mrb[0].mxu0
  %344 = vdwg.mxu0
  %v345 = vsel %vm228, %v337, -inf
  %346 = vmax.xlane.f32.xlu0 %v345
  %v347 = vpop.xlane.xlu0 %346
  %v348 = vsel %vm228, %v342, -inf
  %349 = vmax.xlane.f32.xlu0 %v348
  %v350 = vpop.xlane.xlu0 %349
  %v351 = vsub.f32 %v337, %v347
  %v352 = vsub.f32 %v342, %v350
  %v353 = vmul.f32 %v351, 1.442695
  %v354 = vpow.pop %v353
  %v355 = vmul.f32 %v352, 1.442695
  %v356 = vpow.pop %v355
  %v357 = vsel %vm228, %v354, 0.0
  %358 = vadd.xlane.f32.xlu0 %v357
  %v359 = vpop.xlane.xlu0 %358
  %v360 = vsel %vm228, %v356, 0.0
  %361 = vadd.xlane.f32.xlu0 %v360
  %v362 = vpop.xlane.xlu0 %361
  %v363 = vrcp.pop %v359
  %v364 = vrcp.pop %v362
  %v365 = vmul.f32 %v354, %v363
  %v366 = vmul.f32 %v356, %v364
  %368 = vrot.lane.b32.xlu0 %v261, 64
  %v369 = vpop.permute.xlu0 %368
  %v371 = vmul.f32 %v118, %v369
  %v372 = vmul.f32 %v123, %v369
  %375 = vrot.lane.b32.xlu0 %v371, 64
  %v376 = vpop.permute.xlu0 %375
  %377 = vrot.lane.b32.xlu0 %v372, 64
  %v378 = vpop.permute.xlu0 %377
  %v382 = vsel %vm228, %v365, 0
  %v385 = vsel %vm228, %v366, 0
  %387 = vmatprep.subr.mxu0 0.0
  %388 = vmatpush1.msra.mxu0 %v376
  %389 = vmatprep.subr.mxu0 0.0
  %390 = vmatpush1.msra.mxu0 %v378
  %391 = vmatprep.subr.mxu0 0.0
  %392 = vmatpush1.msra.mxu0 0.0
  %393 = vmatprep.subr.mxu0 0.0
  %394 = vmatpush1.msra.mxu0 0.0
  %395 = vmatprep.subr.mxu0 0.0
  %396 = vmatpush1.msra.mxu0 0.0
  %397 = vmatprep.subr.mxu0 0.0
  %398 = vmatpush1.msra.mxu0 0.0
  %399 = vmatprep.subr.mxu0 0.0
  %400 = vmatpush1.msra.mxu0 0.0
  %401 = vmatprep.subr.mxu0 0.0
  %402 = vmatpush1.msra.mxu0 0.0
  %403 = vmatprep.subr.mxu0 0.0
  %404 = vmatpush1.msra.mxu0 0.0
  %405 = vmatprep.subr.mxu0 0.0
  %406 = vmatpush1.msra.mxu0 0.0
  %407 = vmatprep.subr.mxu0 0.0
  %408 = vmatpush1.msra.mxu0 0.0
  %409 = vmatprep.subr.mxu0 0.0
  %410 = vmatpush1.msra.mxu0 0.0
  %411 = vmatprep.subr.mxu0 0.0
  %412 = vmatpush1.msra.mxu0 0.0
  %413 = vmatprep.subr.mxu0 0.0
  %414 = vmatpush1.msra.mxu0 0.0
  %415 = vmatprep.subr.mxu0 0.0
  %416 = vmatpush1.msra.mxu0 0.0
  %417 = vmatprep.subr.mxu0 0.0
  %418 = vmatpush1.msra.mxu0 0.0
  %419 = vmatprep.subr.mxu0 0.0
  %420 = vmatpush1.msra.mxu0 0.0
  %421 = vmatprep.subr.mxu0 0.0
  %422 = vmatpush1.msra.mxu0 0.0
  %423 = vmatprep.subr.mxu0 0.0
  %424 = vmatpush1.msra.mxu0 0.0
  %425 = vmatprep.subr.mxu0 0.0
  %426 = vmatpush1.msra.mxu0 0.0
  %427 = vmatprep.subr.mxu0 0.0
  %428 = vmatpush1.msra.mxu0 0.0
  %429 = vmatprep.subr.mxu0 0.0
  %430 = vmatpush1.msra.mxu0 0.0
  %431 = vmatprep.subr.mxu0 0.0
  %432 = vmatpush1.msra.mxu0 0.0
  %433 = vmatprep.subr.mxu0 0.0
  %434 = vmatpush1.msra.mxu0 0.0
  %435 = vmatprep.subr.mxu0 0.0
  %436 = vmatpush1.msra.mxu0 0.0
  %437 = vmatprep.subr.mxu0 0.0
  %438 = vmatpush1.msra.mxu0 0.0
  %439 = vmatprep.subr.mxu0 0.0
  %440 = vmatpush1.msra.mxu0 0.0
  %441 = vmatprep.subr.mxu0 0.0
  %442 = vmatpush1.msra.mxu0 0.0
  %443 = vmatprep.subr.mxu0 0.0
  %444 = vmatpush1.msra.mxu0 0.0
  %445 = vmatprep.subr.mxu0 0.0
  %446 = vmatpush1.msra.mxu0 0.0
  %447 = vmatprep.subr.mxu0 0.0
  %448 = vmatpush1.msra.mxu0 0.0
  %449 = vmatprep.subr.mxu0 0.0
  %450 = vmatpush1.msra.mxu0 0.0
  %451 = vmatprep.mubr.f32.mxu0 0.0
  %452 = vmatmul.mubr.f32.gmra.mrb[0].mxu0 %v382
  %v453 = vpop.f32.mrb[0].mxu0
  %v454 = vadd.f32 0.0, %v453
  %v455 = vpop.f32.mrb[0].mxu0
  %456 = vmatprep.mubr.f32.mxu0 0.0
  %457 = vmatmul.mubr.f32.gmra.mrb[0].mxu0 %v385
  %v458 = vpop.f32.mrb[0].mxu0
  %v459 = vadd.f32 0.0, %v458
  %v460 = vpop.f32.mrb[0].mxu0
  %461 = vdwg.mxu0
  %464 = vrot.lane.b32.xlu0 %v255, 64
  %v465 = vpop.permute.xlu0 %464
  %466 = vrot.lane.b32.xlu0 %v256, 64
  %v467 = vpop.permute.xlu0 %466
  %v471 = vsel %vm228, %v249, 0
  %v474 = vsel %vm228, %v250, 0
  %476 = vmatprep.subr.mxu0 0.0
  %477 = vmatpush1.msra.mxu0 %v465
  %478 = vmatprep.subr.mxu0 0.0
  %479 = vmatpush1.msra.mxu0 %v467
  %480 = vmatprep.subr.mxu0 0.0
  %481 = vmatpush1.msra.mxu0 0.0
  %482 = vmatprep.subr.mxu0 0.0
  %483 = vmatpush1.msra.mxu0 0.0
  %484 = vmatprep.subr.mxu0 0.0
  %485 = vmatpush1.msra.mxu0 0.0
  %486 = vmatprep.subr.mxu0 0.0
  %487 = vmatpush1.msra.mxu0 0.0
  %488 = vmatprep.subr.mxu0 0.0
  %489 = vmatpush1.msra.mxu0 0.0
  %490 = vmatprep.subr.mxu0 0.0
  %491 = vmatpush1.msra.mxu0 0.0
  %492 = vmatprep.subr.mxu0 0.0
  %493 = vmatpush1.msra.mxu0 0.0
  %494 = vmatprep.subr.mxu0 0.0
  %495 = vmatpush1.msra.mxu0 0.0
  %496 = vmatprep.subr.mxu0 0.0
  %497 = vmatpush1.msra.mxu0 0.0
  %498 = vmatprep.subr.mxu0 0.0
  %499 = vmatpush1.msra.mxu0 0.0
  %500 = vmatprep.subr.mxu0 0.0
  %501 = vmatpush1.msra.mxu0 0.0
  %502 = vmatprep.subr.mxu0 0.0
  %503 = vmatpush1.msra.mxu0 0.0
  %504 = vmatprep.subr.mxu0 0.0
  %505 = vmatpush1.msra.mxu0 0.0
  %506 = vmatprep.subr.mxu0 0.0
  %507 = vmatpush1.msra.mxu0 0.0
  %508 = vmatprep.subr.mxu0 0.0
  %509 = vmatpush1.msra.mxu0 0.0
  %510 = vmatprep.subr.mxu0 0.0
  %511 = vmatpush1.msra.mxu0 0.0
  %512 = vmatprep.subr.mxu0 0.0
  %513 = vmatpush1.msra.mxu0 0.0
  %514 = vmatprep.subr.mxu0 0.0
  %515 = vmatpush1.msra.mxu0 0.0
  %516 = vmatprep.subr.mxu0 0.0
  %517 = vmatpush1.msra.mxu0 0.0
  %518 = vmatprep.subr.mxu0 0.0
  %519 = vmatpush1.msra.mxu0 0.0
  %520 = vmatprep.subr.mxu0 0.0
  %521 = vmatpush1.msra.mxu0 0.0
  %522 = vmatprep.subr.mxu0 0.0
  %523 = vmatpush1.msra.mxu0 0.0
  %524 = vmatprep.subr.mxu0 0.0
  %525 = vmatpush1.msra.mxu0 0.0
  %526 = vmatprep.subr.mxu0 0.0
  %527 = vmatpush1.msra.mxu0 0.0
  %528 = vmatprep.subr.mxu0 0.0
  %529 = vmatpush1.msra.mxu0 0.0
  %530 = vmatprep.subr.mxu0 0.0
  %531 = vmatpush1.msra.mxu0 0.0
  %532 = vmatprep.subr.mxu0 0.0
  %533 = vmatpush1.msra.mxu0 0.0
  %534 = vmatprep.subr.mxu0 0.0
  %535 = vmatpush1.msra.mxu0 0.0
  %536 = vmatprep.subr.mxu0 0.0
  %537 = vmatpush1.msra.mxu0 0.0
  %538 = vmatprep.subr.mxu0 0.0
  %539 = vmatpush1.msra.mxu0 0.0
  %540 = vmatprep.mubr.f32.mxu0 0.0
  %541 = vmatmul.mubr.f32.gmra.mrb[0].mxu0 %v471
  %v542 = vpop.f32.mrb[0].mxu0
  %v543 = vadd.f32 %v454, %v542
  %v544 = vpop.f32.mrb[0].mxu0
  %545 = vmatprep.mubr.f32.mxu0 0.0
  %546 = vmatmul.mubr.f32.gmra.mrb[0].mxu0 %v474
  %v547 = vpop.f32.mrb[0].mxu0
  %v548 = vadd.f32 %v459, %v547
  %v549 = vpop.f32.mrb[0].mxu0
  %550 = vdwg.mxu0
  %v551 = vld [vmem:[%s5 + $0xa] sm:$0x1]
  %v552 = vlaneseq
  %v553 = vshrl.u32 %v552, 7
  %v554 = vsub.s32 0, %v553
  %v555 = vrot.slane %v551, %v554
  %v556 = vmul.f32 %v126, %v555
  %v557 = vmul.f32 %v127, %v555
  %v559 = vsel %vm44, %v556, 0
  %v562 = vsel %vm44, %v557, 0
  %564 = vmatprep.subr.mxu0 0.0
  %565 = vmatpush1.xpose.msra.mxu0 %v149
  %566 = vmatprep.subr.mxu0 0.0
  %567 = vmatpush1.xpose.msra.mxu0 %v151
  %568 = vmatprep.subr.mxu0 0.0
  %569 = vmatpush1.xpose.msra.mxu0 0.0
  %570 = vmatprep.subr.mxu0 0.0
  %571 = vmatpush1.xpose.msra.mxu0 0.0
  %572 = vmatprep.subr.mxu0 0.0
  %573 = vmatpush1.xpose.msra.mxu0 0.0
  %574 = vmatprep.subr.mxu0 0.0
  %575 = vmatpush1.xpose.msra.mxu0 0.0
  %576 = vmatprep.subr.mxu0 0.0
  %577 = vmatpush1.xpose.msra.mxu0 0.0
  %578 = vmatprep.subr.mxu0 0.0
  %579 = vmatpush1.xpose.msra.mxu0 0.0
  %580 = vmatprep.subr.mxu0 0.0
  %581 = vmatpush1.xpose.msra.mxu0 0.0
  %582 = vmatprep.subr.mxu0 0.0
  %583 = vmatpush1.xpose.msra.mxu0 0.0
  %584 = vmatprep.subr.mxu0 0.0
  %585 = vmatpush1.xpose.msra.mxu0 0.0
  %586 = vmatprep.subr.mxu0 0.0
  %587 = vmatpush1.xpose.msra.mxu0 0.0
  %588 = vmatprep.subr.mxu0 0.0
  %589 = vmatpush1.xpose.msra.mxu0 0.0
  %590 = vmatprep.subr.mxu0 0.0
  %591 = vmatpush1.xpose.msra.mxu0 0.0
  %592 = vmatprep.subr.mxu0 0.0
  %593 = vmatpush1.xpose.msra.mxu0 0.0
  %594 = vmatprep.subr.mxu0 0.0
  %595 = vmatpush1.xpose.msra.mxu0 0.0
  %596 = vmatprep.subr.mxu0 0.0
  %597 = vmatpush1.xpose.msra.mxu0 0.0
  %598 = vmatprep.subr.mxu0 0.0
  %599 = vmatpush1.xpose.msra.mxu0 0.0
  %600 = vmatprep.subr.mxu0 0.0
  %601 = vmatpush1.xpose.msra.mxu0 0.0
  %602 = vmatprep.subr.mxu0 0.0
  %603 = vmatpush1.xpose.msra.mxu0 0.0
  %604 = vmatprep.subr.mxu0 0.0
  %605 = vmatpush1.xpose.msra.mxu0 0.0
  %606 = vmatprep.subr.mxu0 0.0
  %607 = vmatpush1.xpose.msra.mxu0 0.0
  %608 = vmatprep.subr.mxu0 0.0
  %609 = vmatpush1.xpose.msra.mxu0 0.0
  %610 = vmatprep.subr.mxu0 0.0
  %611 = vmatpush1.xpose.msra.mxu0 0.0
  %612 = vmatprep.subr.mxu0 0.0
  %613 = vmatpush1.xpose.msra.mxu0 0.0
  %614 = vmatprep.subr.mxu0 0.0
  %615 = vmatpush1.xpose.msra.mxu0 0.0
  %616 = vmatprep.subr.mxu0 0.0
  %617 = vmatpush1.xpose.msra.mxu0 0.0
  %618 = vmatprep.subr.mxu0 0.0
  %619 = vmatpush1.xpose.msra.mxu0 0.0
  %620 = vmatprep.subr.mxu0 0.0
  %621 = vmatpush1.xpose.msra.mxu0 0.0
  %622 = vmatprep.subr.mxu0 0.0
  %623 = vmatpush1.xpose.msra.mxu0 0.0
  %624 = vmatprep.subr.mxu0 0.0
  %625 = vmatpush1.xpose.msra.mxu0 0.0
  %626 = vmatprep.subr.mxu0 0.0
  %627 = vmatpush1.xpose.msra.mxu0 0.0
  %628 = vmatprep.mubr.f32.mxu0 0.0
  %629 = vmatmul.mubr.f32.gmra.mrb[0].mxu0 %v559
  %v630 = vpop.f32.mrb[0].mxu0
  %v631 = vadd.f32 %v128, %v630
  %v632 = vpop.f32.mrb[0].mxu0
  %633 = vmatprep.mubr.f32.mxu0 0.0
  %634 = vmatmul.mubr.f32.gmra.mrb[0].mxu0 %v562
  %v635 = vpop.f32.mrb[0].mxu0
  %v636 = vadd.f32 %v129, %v635
  %v637 = vpop.f32.mrb[0].mxu0
  %638 = vdwg.mxu0
  %v639 = vsel %vm228, %v631, -inf
  %640 = vmax.xlane.f32.xlu0 %v639
  %v641 = vpop.xlane.xlu0 %640
  %v642 = vsel %vm228, %v636, -inf
  %643 = vmax.xlane.f32.xlu0 %v642
  %v644 = vpop.xlane.xlu0 %643
  %v645 = vsub.f32 %v631, %v641
  %v646 = vsub.f32 %v636, %v644
  %v647 = vmul.f32 %v645, 1.442695
  %v648 = vpow.pop %v647
  %v649 = vmul.f32 %v646, 1.442695
  %v650 = vpow.pop %v649
  %v651 = vsel %vm228, %v648, 0.0
  %652 = vadd.xlane.f32.xlu0 %v651
  %v653 = vpop.xlane.xlu0 %652
  %v654 = vsel %vm228, %v650, 0.0
  %655 = vadd.xlane.f32.xlu0 %v654
  %v656 = vpop.xlane.xlu0 %655
  %v657 = vrcp.pop %v653
  %v658 = vrcp.pop %v656
  %v659 = vmul.f32 %v648, %v657
  %v660 = vmul.f32 %v650, %v658
  %662 = vrot.lane.b32.xlu0 %v555, 64
  %v663 = vpop.permute.xlu0 %662
  %v665 = vmul.f32 %v118, %v663
  %v666 = vmul.f32 %v123, %v663
  %669 = vrot.lane.b32.xlu0 %v665, 64
  %v670 = vpop.permute.xlu0 %669
  %671 = vrot.lane.b32.xlu0 %v666, 64
  %v672 = vpop.permute.xlu0 %671
  %v676 = vsel %vm228, %v659, 0
  %v679 = vsel %vm228, %v660, 0
  %681 = vmatprep.subr.mxu0 0.0
  %682 = vmatpush1.msra.mxu0 %v670
  %683 = vmatprep.subr.mxu0 0.0
  %684 = vmatpush1.msra.mxu0 %v672
  %685 = vmatprep.subr.mxu0 0.0
  %686 = vmatpush1.msra.mxu0 0.0
  %687 = vmatprep.subr.mxu0 0.0
  %688 = vmatpush1.msra.mxu0 0.0
  %689 = vmatprep.subr.mxu0 0.0
  %690 = vmatpush1.msra.mxu0 0.0
  %691 = vmatprep.subr.mxu0 0.0
  %692 = vmatpush1.msra.mxu0 0.0
  %693 = vmatprep.subr.mxu0 0.0
  %694 = vmatpush1.msra.mxu0 0.0
  %695 = vmatprep.subr.mxu0 0.0
  %696 = vmatpush1.msra.mxu0 0.0
  %697 = vmatprep.subr.mxu0 0.0
  %698 = vmatpush1.msra.mxu0 0.0
  %699 = vmatprep.subr.mxu0 0.0
  %700 = vmatpush1.msra.mxu0 0.0
  %701 = vmatprep.subr.mxu0 0.0
  %702 = vmatpush1.msra.mxu0 0.0
  %703 = vmatprep.subr.mxu0 0.0
  %704 = vmatpush1.msra.mxu0 0.0
  %705 = vmatprep.subr.mxu0 0.0
  %706 = vmatpush1.msra.mxu0 0.0
  %707 = vmatprep.subr.mxu0 0.0
  %708 = vmatpush1.msra.mxu0 0.0
  %709 = vmatprep.subr.mxu0 0.0
  %710 = vmatpush1.msra.mxu0 0.0
  %711 = vmatprep.subr.mxu0 0.0
  %712 = vmatpush1.msra.mxu0 0.0
  %713 = vmatprep.subr.mxu0 0.0
  %714 = vmatpush1.msra.mxu0 0.0
  %715 = vmatprep.subr.mxu0 0.0
  %716 = vmatpush1.msra.mxu0 0.0
  %717 = vmatprep.subr.mxu0 0.0
  %718 = vmatpush1.msra.mxu0 0.0
  %719 = vmatprep.subr.mxu0 0.0
  %720 = vmatpush1.msra.mxu0 0.0
  %721 = vmatprep.subr.mxu0 0.0
  %722 = vmatpush1.msra.mxu0 0.0
  %723 = vmatprep.subr.mxu0 0.0
  %724 = vmatpush1.msra.mxu0 0.0
  %725 = vmatprep.subr.mxu0 0.0
  %726 = vmatpush1.msra.mxu0 0.0
  %727 = vmatprep.subr.mxu0 0.0
  %728 = vmatpush1.msra.mxu0 0.0
  %729 = vmatprep.subr.mxu0 0.0
  %730 = vmatpush1.msra.mxu0 0.0
  %731 = vmatprep.subr.mxu0 0.0
  %732 = vmatpush1.msra.mxu0 0.0
  %733 = vmatprep.subr.mxu0 0.0
  %734 = vmatpush1.msra.mxu0 0.0
  %735 = vmatprep.subr.mxu0 0.0
  %736 = vmatpush1.msra.mxu0 0.0
  %737 = vmatprep.subr.mxu0 0.0
  %738 = vmatpush1.msra.mxu0 0.0
  %739 = vmatprep.subr.mxu0 0.0
  %740 = vmatpush1.msra.mxu0 0.0
  %741 = vmatprep.subr.mxu0 0.0
  %742 = vmatpush1.msra.mxu0 0.0
  %743 = vmatprep.subr.mxu0 0.0
  %744 = vmatpush1.msra.mxu0 0.0
  %745 = vmatprep.mubr.f32.mxu0 0.0
  %746 = vmatmul.mubr.f32.gmra.mrb[0].mxu0 %v676
  %v747 = vpop.f32.mrb[0].mxu0
  %v748 = vadd.f32 0.0, %v747
  %v749 = vpop.f32.mrb[0].mxu0
  %750 = vmatprep.mubr.f32.mxu0 0.0
  %751 = vmatmul.mubr.f32.gmra.mrb[0].mxu0 %v679
  %v752 = vpop.f32.mrb[0].mxu0
  %v753 = vadd.f32 0.0, %v752
  %v754 = vpop.f32.mrb[0].mxu0
  %755 = vdwg.mxu0
  %v756 = vadd.f32 %v543, %v748
  %v757 = vadd.f32 %v548, %v753
  %v758 = vld [vmem:[%s5 + $0xb] sm:$0x1]
  %v759 = vlaneseq
  %v760 = vshrl.u32 %v759, 7
  %v761 = vsub.s32 0, %v760
  %v762 = vrot.slane %v758, %v761
  %v763 = vmul.f32 %v126, %v762
  %v764 = vmul.f32 %v127, %v762
  %v766 = vsel %vm44, %v763, 0
  %v769 = vsel %vm44, %v764, 0
  %771 = vmatprep.subr.mxu0 0.0
  %772 = vmatpush1.xpose.msra.mxu0 %v149
  %773 = vmatprep.subr.mxu0 0.0
  %774 = vmatpush1.xpose.msra.mxu0 %v151
  %775 = vmatprep.subr.mxu0 0.0
  %776 = vmatpush1.xpose.msra.mxu0 0.0
  %777 = vmatprep.subr.mxu0 0.0
  %778 = vmatpush1.xpose.msra.mxu0 0.0
  %779 = vmatprep.subr.mxu0 0.0
  %780 = vmatpush1.xpose.msra.mxu0 0.0
  %781 = vmatprep.subr.mxu0 0.0
  %782 = vmatpush1.xpose.msra.mxu0 0.0
  %783 = vmatprep.subr.mxu0 0.0
  %784 = vmatpush1.xpose.msra.mxu0 0.0
  %785 = vmatprep.subr.mxu0 0.0
  %786 = vmatpush1.xpose.msra.mxu0 0.0
  %787 = vmatprep.subr.mxu0 0.0
  %788 = vmatpush1.xpose.msra.mxu0 0.0
  %789 = vmatprep.subr.mxu0 0.0
  %790 = vmatpush1.xpose.msra.mxu0 0.0
  %791 = vmatprep.subr.mxu0 0.0
  %792 = vmatpush1.xpose.msra.mxu0 0.0
  %793 = vmatprep.subr.mxu0 0.0
  %794 = vmatpush1.xpose.msra.mxu0 0.0
  %795 = vmatprep.subr.mxu0 0.0
  %796 = vmatpush1.xpose.msra.mxu0 0.0
  %797 = vmatprep.subr.mxu0 0.0
  %798 = vmatpush1.xpose.msra.mxu0 0.0
  %799 = vmatprep.subr.mxu0 0.0
  %800 = vmatpush1.xpose.msra.mxu0 0.0
  %801 = vmatprep.subr.mxu0 0.0
  %802 = vmatpush1.xpose.msra.mxu0 0.0
  %803 = vmatprep.subr.mxu0 0.0
  %804 = vmatpush1.xpose.msra.mxu0 0.0
  %805 = vmatprep.subr.mxu0 0.0
  %806 = vmatpush1.xpose.msra.mxu0 0.0
  %807 = vmatprep.subr.mxu0 0.0
  %808 = vmatpush1.xpose.msra.mxu0 0.0
  %809 = vmatprep.subr.mxu0 0.0
  %810 = vmatpush1.xpose.msra.mxu0 0.0
  %811 = vmatprep.subr.mxu0 0.0
  %812 = vmatpush1.xpose.msra.mxu0 0.0
  %813 = vmatprep.subr.mxu0 0.0
  %814 = vmatpush1.xpose.msra.mxu0 0.0
  %815 = vmatprep.subr.mxu0 0.0
  %816 = vmatpush1.xpose.msra.mxu0 0.0
  %817 = vmatprep.subr.mxu0 0.0
  %818 = vmatpush1.xpose.msra.mxu0 0.0
  %819 = vmatprep.subr.mxu0 0.0
  %820 = vmatpush1.xpose.msra.mxu0 0.0
  %821 = vmatprep.subr.mxu0 0.0
  %822 = vmatpush1.xpose.msra.mxu0 0.0
  %823 = vmatprep.subr.mxu0 0.0
  %824 = vmatpush1.xpose.msra.mxu0 0.0
  %825 = vmatprep.subr.mxu0 0.0
  %826 = vmatpush1.xpose.msra.mxu0 0.0
  %827 = vmatprep.subr.mxu0 0.0
  %828 = vmatpush1.xpose.msra.mxu0 0.0
  %829 = vmatprep.subr.mxu0 0.0
  %830 = vmatpush1.xpose.msra.mxu0 0.0
  %831 = vmatprep.subr.mxu0 0.0
  %832 = vmatpush1.xpose.msra.mxu0 0.0
  %833 = vmatprep.subr.mxu0 0.0
  %834 = vmatpush1.xpose.msra.mxu0 0.0
  %835 = vmatprep.mubr.f32.mxu0 0.0
  %836 = vmatmul.mubr.f32.gmra.mrb[0].mxu0 %v766
  %v837 = vpop.f32.mrb[0].mxu0
  %v838 = vadd.f32 %v128, %v837
  %v839 = vpop.f32.mrb[0].mxu0
  %840 = vmatprep.mubr.f32.mxu0 0.0
  %841 = vmatmul.mubr.f32.gmra.mrb[0].mxu0 %v769
  %v842 = vpop.f32.mrb[0].mxu0
  %v843 = vadd.f32 %v129, %v842
  %v844 = vpop.f32.mrb[0].mxu0
  %845 = vdwg.mxu0
  %v846 = vsel %vm228, %v838, -inf
  %847 = vmax.xlane.f32.xlu0 %v846
  %v848 = vpop.xlane.xlu0 %847
  %v849 = vsel %vm228, %v843, -inf
  %850 = vmax.xlane.f32.xlu0 %v849
  %v851 = vpop.xlane.xlu0 %850
  %v852 = vsub.f32 %v838, %v848
  %v853 = vsub.f32 %v843, %v851
  %v854 = vmul.f32 %v852, 1.442695
  %v855 = vpow.pop %v854
  %v856 = vmul.f32 %v853, 1.442695
  %v857 = vpow.pop %v856
  %v858 = vsel %vm228, %v855, 0.0
  %859 = vadd.xlane.f32.xlu0 %v858
  %v860 = vpop.xlane.xlu0 %859
  %v861 = vsel %vm228, %v857, 0.0
  %862 = vadd.xlane.f32.xlu0 %v861
  %v863 = vpop.xlane.xlu0 %862
  %v864 = vrcp.pop %v860
  %v865 = vrcp.pop %v863
  %v866 = vmul.f32 %v855, %v864
  %v867 = vmul.f32 %v857, %v865
  %869 = vrot.lane.b32.xlu0 %v762, 64
  %v870 = vpop.permute.xlu0 %869
  %v872 = vmul.f32 %v118, %v870
  %v873 = vmul.f32 %v123, %v870
  %876 = vrot.lane.b32.xlu0 %v872, 64
  %v877 = vpop.permute.xlu0 %876
  %878 = vrot.lane.b32.xlu0 %v873, 64
  %v879 = vpop.permute.xlu0 %878
  %v883 = vsel %vm228, %v866, 0
  %v886 = vsel %vm228, %v867, 0
  %888 = vmatprep.subr.mxu0 0.0
  %889 = vmatpush1.msra.mxu0 %v877
  %890 = vmatprep.subr.mxu0 0.0
  %891 = vmatpush1.msra.mxu0 %v879
  %892 = vmatprep.subr.mxu0 0.0
  %893 = vmatpush1.msra.mxu0 0.0
  %894 = vmatprep.subr.mxu0 0.0
  %895 = vmatpush1.msra.mxu0 0.0
  %896 = vmatprep.subr.mxu0 0.0
  %897 = vmatpush1.msra.mxu0 0.0
  %898 = vmatprep.subr.mxu0 0.0
  %899 = vmatpush1.msra.mxu0 0.0
  %900 = vmatprep.subr.mxu0 0.0
  %901 = vmatpush1.msra.mxu0 0.0
  %902 = vmatprep.subr.mxu0 0.0
  %903 = vmatpush1.msra.mxu0 0.0
  %904 = vmatprep.subr.mxu0 0.0
  %905 = vmatpush1.msra.mxu0 0.0
  %906 = vmatprep.subr.mxu0 0.0
  %907 = vmatpush1.msra.mxu0 0.0
  %908 = vmatprep.subr.mxu0 0.0
  %909 = vmatpush1.msra.mxu0 0.0
  %910 = vmatprep.subr.mxu0 0.0
  %911 = vmatpush1.msra.mxu0 0.0
  %912 = vmatprep.subr.mxu0 0.0
  %913 = vmatpush1.msra.mxu0 0.0
  %914 = vmatprep.subr.mxu0 0.0
  %915 = vmatpush1.msra.mxu0 0.0
  %916 = vmatprep.subr.mxu0 0.0
  %917 = vmatpush1.msra.mxu0 0.0
  %918 = vmatprep.subr.mxu0 0.0
  %919 = vmatpush1.msra.mxu0 0.0
  %920 = vmatprep.subr.mxu0 0.0
  %921 = vmatpush1.msra.mxu0 0.0
  %922 = vmatprep.subr.mxu0 0.0
  %923 = vmatpush1.msra.mxu0 0.0
  %924 = vmatprep.subr.mxu0 0.0
  %925 = vmatpush1.msra.mxu0 0.0
  %926 = vmatprep.subr.mxu0 0.0
  %927 = vmatpush1.msra.mxu0 0.0
  %928 = vmatprep.subr.mxu0 0.0
  %929 = vmatpush1.msra.mxu0 0.0
  %930 = vmatprep.subr.mxu0 0.0
  %931 = vmatpush1.msra.mxu0 0.0
  %932 = vmatprep.subr.mxu0 0.0
  %933 = vmatpush1.msra.mxu0 0.0
  %934 = vmatprep.subr.mxu0 0.0
  %935 = vmatpush1.msra.mxu0 0.0
  %936 = vmatprep.subr.mxu0 0.0
  %937 = vmatpush1.msra.mxu0 0.0
  %938 = vmatprep.subr.mxu0 0.0
  %939 = vmatpush1.msra.mxu0 0.0
  %940 = vmatprep.subr.mxu0 0.0
  %941 = vmatpush1.msra.mxu0 0.0
  %942 = vmatprep.subr.mxu0 0.0
  %943 = vmatpush1.msra.mxu0 0.0
  %944 = vmatprep.subr.mxu0 0.0
  %945 = vmatpush1.msra.mxu0 0.0
  %946 = vmatprep.subr.mxu0 0.0
  %947 = vmatpush1.msra.mxu0 0.0
  %948 = vmatprep.subr.mxu0 0.0
  %949 = vmatpush1.msra.mxu0 0.0
  %950 = vmatprep.subr.mxu0 0.0
  %951 = vmatpush1.msra.mxu0 0.0
  %952 = vmatprep.mubr.f32.mxu0 0.0
  %953 = vmatmul.mubr.f32.gmra.mrb[0].mxu0 %v883
  %v954 = vpop.f32.mrb[0].mxu0
  %v955 = vadd.f32 0.0, %v954
  %v956 = vpop.f32.mrb[0].mxu0
  %957 = vmatprep.mubr.f32.mxu0 0.0
  %958 = vmatmul.mubr.f32.gmra.mrb[0].mxu0 %v886
  %v959 = vpop.f32.mrb[0].mxu0
  %v960 = vadd.f32 0.0, %v959
  %v961 = vpop.f32.mrb[0].mxu0
  %962 = vdwg.mxu0
  %v963 = vadd.f32 %v756, %v955
  %v964 = vadd.f32 %v757, %v960
  %v965 = vld [vmem:[%s2] sm:$0xff]
  %v966 = vld [vmem:[%s2 + $0x8] sm:$0xff]
  %v967 = vld [vmem:[%s2 + $0x10] sm:$0xff]
  %v968 = vld [vmem:[%s2 + $0x18] sm:$0xff]
  %v969 = vlaneseq
  %v970 = vshrl.u32 %v969, 7
  %v971 = vsub.s32 0, %v970
  %v972 = vrot.slane %v29, %v971
  %v974 = vsel %vm44, %v963, 0
  %v977 = vsel %vm44, %v964, 0
  %979 = vmatprep.subr.mxu0 0.0
  %980 = vmatpush1.msra.mxu0 %v965
  %981 = vmatprep.subr.mxu0 0.0
  %982 = vmatpush1.msra.mxu0 %v966
  %983 = vmatprep.subr.mxu0 0.0
  %984 = vmatpush1.msra.mxu0 %v967
  %985 = vmatprep.subr.mxu0 0.0
  %986 = vmatpush1.msra.mxu0 %v968
  %987 = vmatprep.subr.mxu0 0.0
  %988 = vmatpush1.msra.mxu0 0.0
  %989 = vmatprep.subr.mxu0 0.0
  %990 = vmatpush1.msra.mxu0 0.0
  %991 = vmatprep.subr.mxu0 0.0
  %992 = vmatpush1.msra.mxu0 0.0
  %993 = vmatprep.subr.mxu0 0.0
  %994 = vmatpush1.msra.mxu0 0.0
  %995 = vmatprep.subr.mxu0 0.0
  %996 = vmatpush1.msra.mxu0 0.0
  %997 = vmatprep.subr.mxu0 0.0
  %998 = vmatpush1.msra.mxu0 0.0
  %999 = vmatprep.subr.mxu0 0.0
  %1000 = vmatpush1.msra.mxu0 0.0
  %1001 = vmatprep.subr.mxu0 0.0
  %1002 = vmatpush1.msra.mxu0 0.0
  %1003 = vmatprep.subr.mxu0 0.0
  %1004 = vmatpush1.msra.mxu0 0.0
  %1005 = vmatprep.subr.mxu0 0.0
  %1006 = vmatpush1.msra.mxu0 0.0
  %1007 = vmatprep.subr.mxu0 0.0
  %1008 = vmatpush1.msra.mxu0 0.0
  %1009 = vmatprep.subr.mxu0 0.0
  %1010 = vmatpush1.msra.mxu0 0.0
  %1011 = vmatprep.subr.mxu0 0.0
  %1012 = vmatpush1.msra.mxu0 0.0
  %1013 = vmatprep.subr.mxu0 0.0
  %1014 = vmatpush1.msra.mxu0 0.0
  %1015 = vmatprep.subr.mxu0 0.0
  %1016 = vmatpush1.msra.mxu0 0.0
  %1017 = vmatprep.subr.mxu0 0.0
  %1018 = vmatpush1.msra.mxu0 0.0
  %1019 = vmatprep.subr.mxu0 0.0
  %1020 = vmatpush1.msra.mxu0 0.0
  %1021 = vmatprep.subr.mxu0 0.0
  %1022 = vmatpush1.msra.mxu0 0.0
  %1023 = vmatprep.subr.mxu0 0.0
  %1024 = vmatpush1.msra.mxu0 0.0
  %1025 = vmatprep.subr.mxu0 0.0
  %1026 = vmatpush1.msra.mxu0 0.0
  %1027 = vmatprep.subr.mxu0 0.0
  %1028 = vmatpush1.msra.mxu0 0.0
  %1029 = vmatprep.subr.mxu0 0.0
  %1030 = vmatpush1.msra.mxu0 0.0
  %1031 = vmatprep.subr.mxu0 0.0
  %1032 = vmatpush1.msra.mxu0 0.0
  %1033 = vmatprep.subr.mxu0 0.0
  %1034 = vmatpush1.msra.mxu0 0.0
  %1035 = vmatprep.subr.mxu0 0.0
  %1036 = vmatpush1.msra.mxu0 0.0
  %1037 = vmatprep.subr.mxu0 0.0
  %1038 = vmatpush1.msra.mxu0 0.0
  %1039 = vmatprep.subr.mxu0 0.0
  %1040 = vmatpush1.msra.mxu0 0.0
  %1041 = vmatprep.subr.mxu0 0.0
  %1042 = vmatpush1.msra.mxu0 0.0
  %1043 = vmatprep.mubr.f32.mxu0 0.0
  %1044 = vmatmul.mubr.f32.gmra.mrb[0].mxu0 %v974
  %v1045 = vpop.f32.mrb[0].mxu0
  %v1046 = vadd.f32 %v972, %v1045
  %v1047 = vpop.f32.mrb[0].mxu0
  %1048 = vmatprep.mubr.f32.mxu0 0.0
  %1049 = vmatmul.mubr.f32.gmra.mrb[0].mxu0 %v977
  %v1050 = vpop.f32.mrb[0].mxu0
  %v1051 = vadd.f32 %v972, %v1050
  %v1052 = vpop.f32.mrb[0].mxu0
  %1053 = vdwg.mxu0
  %v1054 = vadd.f32 %v26, %v1046
  %v1055 = vadd.f32 %v27, %v1051
  %v1056 = vsel %vm44, %v1054, 0.0
  %1057 = vadd.xlane.f32.xlu0 %v1056
  %v1058 = vpop.xlane.xlu0 %1057
  %v1059 = vsel %vm44, %v1055, 0.0
  %1060 = vadd.xlane.f32.xlu0 %v1059
  %v1061 = vpop.xlane.xlu0 %1060
  %v1062 = vrcp.pop 32.0
  %v1063 = vmul.f32 %v1058, %v1062
  %v1064 = vmul.f32 %v1061, %v1062
  %v1065 = vsub.f32 %v1054, %v1063
  %v1066 = vsub.f32 %v1055, %v1064
  %v1067 = vmul.f32 %v1065, %v1065
  %v1068 = vmul.f32 %v1066, %v1066
  %v1069 = vsel %vm44, %v1067, 0.0
  %1070 = vadd.xlane.f32.xlu0 %v1069
  %v1071 = vpop.xlane.xlu0 %1070
  %v1072 = vsel %vm44, %v1068, 0.0
  %1073 = vadd.xlane.f32.xlu0 %v1072
  %v1074 = vpop.xlane.xlu0 %1073
  %v1075 = vmul.f32 %v1071, %v1062
  %v1076 = vmul.f32 %v1074, %v1062
  %v1077 = vadd.f32 %v1075, 1e-05
  %v1078 = vadd.f32 %v1076, 1e-05
  %v1079 = vrsqrt.pop %v1077
  %v1080 = vrsqrt.pop %v1078
  %v1081 = vmul.f32 %v1065, %v1079
  %v1082 = vmul.f32 %v1066, %v1080
  %v1083 = vlaneseq
  %v1084 = vshrl.u32 %v1083, 7
  %v1085 = vsub.s32 0, %v1084
  %v1086 = vrot.slane %v32, %v1085
  %v1087 = vmul.f32 %v1081, %v1086
  %v1088 = vmul.f32 %v1082, %v1086
  %v1089 = vlaneseq
  %v1090 = vshrl.u32 %v1089, 7
  %v1091 = vsub.s32 0, %v1090
  %v1092 = vrot.slane %v33, %v1091
  %v1093 = vadd.f32 %v1087, %v1092
  %v1094 = vadd.f32 %v1088, %v1092
  %v1095 = vld [vmem:[%s3] sm:$0xff]
  %v1096 = vld [vmem:[%s3 + $0x8] sm:$0xff]
  %v1097 = vld [vmem:[%s3 + $0x10] sm:$0xff]
  %v1098 = vld [vmem:[%s3 + $0x18] sm:$0xff]
  %v1099 = vlaneseq
  %v1100 = vshrl.u32 %v1099, 7
  %v1101 = vsub.s32 0, %v1100
  %v1102 = vrot.slane %v30, %v1101
  %v1104 = vsel %vm44, %v1093, 0
  %v1107 = vsel %vm44, %v1094, 0
  %1109 = vmatprep.subr.mxu0 0.0
  %1110 = vmatpush1.msra.mxu0 %v1095
  %1111 = vmatprep.subr.mxu0 0.0
  %1112 = vmatpush1.msra.mxu0 %v1096
  %1113 = vmatprep.subr.mxu0 0.0
  %1114 = vmatpush1.msra.mxu0 %v1097
  %1115 = vmatprep.subr.mxu0 0.0
  %1116 = vmatpush1.msra.mxu0 %v1098
  %1117 = vmatprep.subr.mxu0 0.0
  %1118 = vmatpush1.msra.mxu0 0.0
  %1119 = vmatprep.subr.mxu0 0.0
  %1120 = vmatpush1.msra.mxu0 0.0
  %1121 = vmatprep.subr.mxu0 0.0
  %1122 = vmatpush1.msra.mxu0 0.0
  %1123 = vmatprep.subr.mxu0 0.0
  %1124 = vmatpush1.msra.mxu0 0.0
  %1125 = vmatprep.subr.mxu0 0.0
  %1126 = vmatpush1.msra.mxu0 0.0
  %1127 = vmatprep.subr.mxu0 0.0
  %1128 = vmatpush1.msra.mxu0 0.0
  %1129 = vmatprep.subr.mxu0 0.0
  %1130 = vmatpush1.msra.mxu0 0.0
  %1131 = vmatprep.subr.mxu0 0.0
  %1132 = vmatpush1.msra.mxu0 0.0
  %1133 = vmatprep.subr.mxu0 0.0
  %1134 = vmatpush1.msra.mxu0 0.0
  %1135 = vmatprep.subr.mxu0 0.0
  %1136 = vmatpush1.msra.mxu0 0.0
  %1137 = vmatprep.subr.mxu0 0.0
  %1138 = vmatpush1.msra.mxu0 0.0
  %1139 = vmatprep.subr.mxu0 0.0
  %1140 = vmatpush1.msra.mxu0 0.0
  %1141 = vmatprep.subr.mxu0 0.0
  %1142 = vmatpush1.msra.mxu0 0.0
  %1143 = vmatprep.subr.mxu0 0.0
  %1144 = vmatpush1.msra.mxu0 0.0
  %1145 = vmatprep.subr.mxu0 0.0
  %1146 = vmatpush1.msra.mxu0 0.0
  %1147 = vmatprep.subr.mxu0 0.0
  %1148 = vmatpush1.msra.mxu0 0.0
  %1149 = vmatprep.subr.mxu0 0.0
  %1150 = vmatpush1.msra.mxu0 0.0
  %1151 = vmatprep.subr.mxu0 0.0
  %1152 = vmatpush1.msra.mxu0 0.0
  %1153 = vmatprep.subr.mxu0 0.0
  %1154 = vmatpush1.msra.mxu0 0.0
  %1155 = vmatprep.subr.mxu0 0.0
  %1156 = vmatpush1.msra.mxu0 0.0
  %1157 = vmatprep.subr.mxu0 0.0
  %1158 = vmatpush1.msra.mxu0 0.0
  %1159 = vmatprep.subr.mxu0 0.0
  %1160 = vmatpush1.msra.mxu0 0.0
  %1161 = vmatprep.subr.mxu0 0.0
  %1162 = vmatpush1.msra.mxu0 0.0
  %1163 = vmatprep.subr.mxu0 0.0
  %1164 = vmatpush1.msra.mxu0 0.0
  %1165 = vmatprep.subr.mxu0 0.0
  %1166 = vmatpush1.msra.mxu0 0.0
  %1167 = vmatprep.subr.mxu0 0.0
  %1168 = vmatpush1.msra.mxu0 0.0
  %1169 = vmatprep.subr.mxu0 0.0
  %1170 = vmatpush1.msra.mxu0 0.0
  %1171 = vmatprep.subr.mxu0 0.0
  %1172 = vmatpush1.msra.mxu0 0.0
  %1173 = vmatprep.mubr.f32.mxu0 0.0
  %1174 = vmatmul.mubr.f32.gmra.mrb[0].mxu0 %v1104
  %v1175 = vpop.f32.mrb[0].mxu0
  %v1176 = vadd.f32 %v1102, %v1175
  %v1177 = vpop.f32.mrb[0].mxu0
  %1178 = vmatprep.mubr.f32.mxu0 0.0
  %1179 = vmatmul.mubr.f32.gmra.mrb[0].mxu0 %v1107
  %v1180 = vpop.f32.mrb[0].mxu0
  %v1181 = vadd.f32 %v1102, %v1180
  %v1182 = vpop.f32.mrb[0].mxu0
  %1183 = vdwg.mxu0
  %v1184 = vmax.f32 %v1176, 0.0
  %v1185 = vmax.f32 %v1181, 0.0
  %v1186 = vld [vmem:[%s4] sm:$0xff]
  %v1187 = vld [vmem:[%s4 + $0x8] sm:$0xff]
  %v1188 = vld [vmem:[%s4 + $0x10] sm:$0xff]
  %v1189 = vld [vmem:[%s4 + $0x18] sm:$0xff]
  %v1190 = vld [vmem:[%s4 + $0x20] sm:$0xff]
  %v1191 = vld [vmem:[%s4 + $0x28] sm:$0xff]
  %v1192 = vld [vmem:[%s4 + $0x30] sm:$0xff]
  %v1193 = vld [vmem:[%s4 + $0x38] sm:$0xff]
  %v1194 = vlaneseq
  %v1195 = vshrl.u32 %v1194, 7
  %v1196 = vsub.s32 0, %v1195
  %v1197 = vrot.slane %v31, %v1196
  %vm1198 = vcmask 523264
  %v1200 = vsel %vm1198, %v1184, 0
  %v1203 = vsel %vm1198, %v1185, 0
  %1205 = vmatprep.subr.mxu0 0.0
  %1206 = vmatpush1.msra.mxu0 %v1186
  %1207 = vmatprep.subr.mxu0 0.0
  %1208 = vmatpush1.msra.mxu0 %v1187
  %1209 = vmatprep.subr.mxu0 0.0
  %1210 = vmatpush1.msra.mxu0 %v1188
  %1211 = vmatprep.subr.mxu0 0.0
  %1212 = vmatpush1.msra.mxu0 %v1189
  %1213 = vmatprep.subr.mxu0 0.0
  %1214 = vmatpush1.msra.mxu0 %v1190
  %1215 = vmatprep.subr.mxu0 0.0
  %1216 = vmatpush1.msra.mxu0 %v1191
  %1217 = vmatprep.subr.mxu0 0.0
  %1218 = vmatpush1.msra.mxu0 %v1192
  %1219 = vmatprep.subr.mxu0 0.0
  %1220 = vmatpush1.msra.mxu0 %v1193
  %1221 = vmatprep.subr.mxu0 0.0
  %1222 = vmatpush1.msra.mxu0 0.0
  %1223 = vmatprep.subr.mxu0 0.0
  %1224 = vmatpush1.msra.mxu0 0.0
  %1225 = vmatprep.subr.mxu0 0.0
  %1226 = vmatpush1.msra.mxu0 0.0
  %1227 = vmatprep.subr.mxu0 0.0
  %1228 = vmatpush1.msra.mxu0 0.0
  %1229 = vmatprep.subr.mxu0 0.0
  %1230 = vmatpush1.msra.mxu0 0.0
  %1231 = vmatprep.subr.mxu0 0.0
  %1232 = vmatpush1.msra.mxu0 0.0
  %1233 = vmatprep.subr.mxu0 0.0
  %1234 = vmatpush1.msra.mxu0 0.0
  %1235 = vmatprep.subr.mxu0 0.0
  %1236 = vmatpush1.msra.mxu0 0.0
  %1237 = vmatprep.subr.mxu0 0.0
  %1238 = vmatpush1.msra.mxu0 0.0
  %1239 = vmatprep.subr.mxu0 0.0
  %1240 = vmatpush1.msra.mxu0 0.0
  %1241 = vmatprep.subr.mxu0 0.0
  %1242 = vmatpush1.msra.mxu0 0.0
  %1243 = vmatprep.subr.mxu0 0.0
  %1244 = vmatpush1.msra.mxu0 0.0
  %1245 = vmatprep.subr.mxu0 0.0
  %1246 = vmatpush1.msra.mxu0 0.0
  %1247 = vmatprep.subr.mxu0 0.0
  %1248 = vmatpush1.msra.mxu0 0.0
  %1249 = vmatprep.subr.mxu0 0.0
  %1250 = vmatpush1.msra.mxu0 0.0
  %1251 = vmatprep.subr.mxu0 0.0
  %1252 = vmatpush1.msra.mxu0 0.0
  %1253 = vmatprep.subr.mxu0 0.0
  %1254 = vmatpush1.msra.mxu0 0.0
  %1255 = vmatprep.subr.mxu0 0.0
  %1256 = vmatpush1.msra.mxu0 0.0
  %1257 = vmatprep.subr.mxu0 0.0
  %1258 = vmatpush1.msra.mxu0 0.0
  %1259 = vmatprep.subr.mxu0 0.0
  %1260 = vmatpush1.msra.mxu0 0.0
  %1261 = vmatprep.subr.mxu0 0.0
  %1262 = vmatpush1.msra.mxu0 0.0
  %1263 = vmatprep.subr.mxu0 0.0
  %1264 = vmatpush1.msra.mxu0 0.0
  %1265 = vmatprep.subr.mxu0 0.0
  %1266 = vmatpush1.msra.mxu0 0.0
  %1267 = vmatprep.subr.mxu0 0.0
  %1268 = vmatpush1.msra.mxu0 0.0
  %1269 = vmatprep.mubr.f32.mxu0 0.0
  %1270 = vmatmul.mubr.f32.gmra.mrb[0].mxu0 %v1200
  %v1271 = vpop.f32.mrb[0].mxu0
  %v1272 = vadd.f32 %v1197, %v1271
  %v1273 = vpop.f32.mrb[0].mxu0
  %1274 = vmatprep.mubr.f32.mxu0 0.0
  %1275 = vmatmul.mubr.f32.gmra.mrb[0].mxu0 %v1203
  %v1276 = vpop.f32.mrb[0].mxu0
  %v1277 = vadd.f32 %v1197, %v1276
  %v1278 = vpop.f32.mrb[0].mxu0
  %1279 = vdwg.mxu0
  %v1280 = vadd.f32 %v1093, %v1272
  %v1281 = vadd.f32 %v1094, %v1277
  %v1282 = vsel %vm44, %v1280, 0.0
  %1283 = vadd.xlane.f32.xlu0 %v1282
  %v1284 = vpop.xlane.xlu0 %1283
  %v1285 = vsel %vm44, %v1281, 0.0
  %1286 = vadd.xlane.f32.xlu0 %v1285
  %v1287 = vpop.xlane.xlu0 %1286
  %v1288 = vmul.f32 %v1284, %v1062
  %v1289 = vmul.f32 %v1287, %v1062
  %v1290 = vsub.f32 %v1280, %v1288
  %v1291 = vsub.f32 %v1281, %v1289
  %v1292 = vmul.f32 %v1290, %v1290
  %v1293 = vmul.f32 %v1291, %v1291
  %v1294 = vsel %vm44, %v1292, 0.0
  %1295 = vadd.xlane.f32.xlu0 %v1294
  %v1296 = vpop.xlane.xlu0 %1295
  %v1297 = vsel %vm44, %v1293, 0.0
  %1298 = vadd.xlane.f32.xlu0 %v1297
  %v1299 = vpop.xlane.xlu0 %1298
  %v1300 = vmul.f32 %v1296, %v1062
  %v1301 = vmul.f32 %v1299, %v1062
  %v1302 = vadd.f32 %v1300, 1e-05
  %v1303 = vadd.f32 %v1301, 1e-05
  %v1304 = vrsqrt.pop %v1302
  %v1305 = vrsqrt.pop %v1303
  %v1306 = vmul.f32 %v1290, %v1304
  %v1307 = vmul.f32 %v1291, %v1305
  %v1308 = vlaneseq
  %v1309 = vshrl.u32 %v1308, 7
  %v1310 = vsub.s32 0, %v1309
  %v1311 = vrot.slane %v34, %v1310
  %v1312 = vmul.f32 %v1306, %v1311
  %v1313 = vmul.f32 %v1307, %v1311
  %v1314 = vlaneseq
  %v1315 = vshrl.u32 %v1314, 7
  %v1316 = vsub.s32 0, %v1315
  %v1317 = vrot.slane %v35, %v1316
  %v1318 = vadd.f32 %v1312, %v1317
  %v1319 = vadd.f32 %v1313, %v1317
  %v1321 = vrot.slane %v1318, 4
  %1322 = vrot.lane.b32.xlu0 %v1321, 32
  %v1323 = vpop.permute.xlu0 %1322
  %1326 = vrot.lane.b32.xlu0 %v1319, 64
  %v1327 = vpop.permute.xlu0 %1326
  %v1329 = vrot.slane %v1319, 4
  %1330 = vrot.lane.b32.xlu0 %v1329, 96
  %v1331 = vpop.permute.xlu0 %1330
  %v1333 = vsel %vm44, %v1318, %v1323
  %v1334 = vsel %vm1198, %v1333, %v1327
  %vm1335 = vcmask 785408
  %v1336 = vsel %vm1335, %v1334, %v1331
  %1337 = vst [vmem:[%s7] sm:$0xf] %v1336
  // Predicated region
  $region30: #{transformer_encoder_layer.1} parent=0 // pred_check
    _
  $region31: #{transformer_encoder_layer.1} parent=0 // pred_check_branch
    %1339 = sbr.rel (0) target = $region33
  $region32: #{transformer_encoder_layer.1} parent=0 // pred_region
    _
  $region33: #{transformer_encoder_layer.1} parent=0 // pred_fallthru
    _
  // Predicated region
  $region34: #{transformer_encoder_layer.1} parent=0 // pred_check
    _
  $region35: #{transformer_encoder_layer.1} parent=0 // pred_check_branch
    %1341 = sbr.rel (0) target = $region37
  $region36: #{transformer_encoder_layer.1} parent=0 // pred_region
    _
  $region37: #{transformer_encoder_layer.1} parent=0 // pred_fallthru
    _

</llo_original>
